<compile_context>
chip_gen: v6e
topology: v6e:2x2x1
jax: 0.10.0
libtpu: 0.0.40
codegen_flags: <defaults>
</compile_context>

<pallas_src>
import functools

import jax
import jax.numpy as jnp
from jax.experimental import pallas as pl
from jax.experimental.pallas import tpu as pltpu


def _coff_conv_kernel(fea_ref,
                      w1t_ref, b1_ref, w2t_ref, b2_ref,
                      out_ref,
                      sum_sc, sumsq_sc,
                      *, inv_hw):
    f32 = jnp.float32
    k = pl.program_id(1)

    @pl.when(k == 0)
    def _():
        sum_sc[...] = jnp.zeros_like(sum_sc)
        sumsq_sc[...] = jnp.zeros_like(sumsq_sc)

    # Single pass over this (B, C, THW) tile: accumulate sum and sum-of-squares
    # (halves on-chip traffic vs. the two-pass variance; exact enough in f32).
    x = fea_ref[...].astype(f32)
    sum_sc[...] += jnp.sum(x, axis=2)
    sumsq_sc[...] += jnp.sum(x * x, axis=2)

    @pl.when(k == pl.num_programs(1) - 1)
    def _():
        mean = sum_sc[...] * inv_hw                                    # (B, C)
        var = jnp.maximum(sumsq_sc[...] * inv_hw - mean * mean, 0.0)   # clamp >= 0
        std = jnp.sqrt(var)

        def branch(v, idx):
            # conv1x1 (C -> C/16) + ReLU, batched over B rows
            h = jnp.dot(v, w1t_ref[idx], preferred_element_type=f32) + b1_ref[idx]
            h = jnp.maximum(h, 0.0)
            # conv1x1 (C/16 -> C) + ReLU
            h = jnp.dot(h, w2t_ref[idx], preferred_element_type=f32) + b2_ref[idx]
            h = jnp.maximum(h, 0.0)
            # exact sigmoid (exp on EUP; the tiny divide is negligible)
            return 1.0 / (1.0 + jnp.exp(-h))                           # (B, C)

        upper = branch(mean, 0)
        lower = branch(std, 1)
        out_ref[...] = ((upper + lower) * 0.5)[None].astype(out_ref.dtype)


def _choose_batch_block(N, C, HW, itemsize, target_bytes=4 << 20):
    """Batch elements per grid step: ~4 MiB input tile, >=2 grid steps, B | N."""
    per_elem = max(C * HW * itemsize, 1)
    B = max(1, min(N, target_bytes // per_elem))
    if N >= 2:
        B = min(B, pl.cdiv(N, 2))    # keep >= 2 parallel steps (v7x: 2 TCs)
    while N % B != 0:                # avoid padded partial batch blocks
        B -= 1
    return B


def _choose_hw_tile(HW, C, B, itemsize, target_bytes=8 << 20):
    """Spatial tile: whole extent if it fits; else a 128-multiple divisor of HW."""
    if B * C * HW * itemsize <= target_bytes or HW <= 128:
        return HW
    max_thw = max(128, (target_bytes // (B * C * itemsize)) // 128 * 128)
    for thw in range(max_thw, 0, -128):
        if HW % thw == 0:
            return thw
    # TODO(synk): no 128-multiple divisor of HW; falls back to the full extent.
    return HW


def coff_conv_pallas(fea, params):
    """fea: (N, C, H, W) NCHW. Returns (N, C, 1, 1), matching PyTorch CoffConv."""
    N, C, H, W = fea.shape
    HW = H * W
    fea3 = fea.reshape(N, C, HW)                 # free reshape, no transpose

    w1u, b1u, w2u, b2u, w1l, b1l, w2l, b2l = params
    r = w1u.shape[0]
    f32 = jnp.float32

    # Pack 8 tiny operands into 4 (index 0 = upper branch, 1 = lower branch),
    # pre-transposed so the in-kernel matmuls are plain (B,C)@(C,r)/(B,r)@(r,C).
    w1t = jnp.stack([w1u.T, w1l.T]).astype(f32)                        # (2, C, r)
    w2t = jnp.stack([w2u.T, w2l.T]).astype(f32)                        # (2, r, C)
    b1 = jnp.stack([b1u.reshape(1, r), b1l.reshape(1, r)]).astype(f32)  # (2, 1, r)
    b2 = jnp.stack([b2u.reshape(1, C), b2l.reshape(1, C)]).astype(f32)  # (2, 1, C)

    itemsize = fea3.dtype.itemsize
    B = _choose_batch_block(N, C, HW, itemsize)
    THW = _choose_hw_tile(HW, C, B, itemsize)
    nb = N // B
    nhw = pl.cdiv(HW, THW)

    kernel = functools.partial(_coff_conv_kernel, inv_hw=1.0 / HW)

    def const_spec(arr):                         # full-array block, DMA'd once
        return pl.BlockSpec(arr.shape, lambda n, k, _nd=arr.ndim: (0,) * _nd)

    out3 = pl.pallas_call(
        kernel,
        out_shape=jax.ShapeDtypeStruct((nb, B, C), fea.dtype),
        grid_spec=pltpu.PrefetchScalarGridSpec(
            num_scalar_prefetch=0,
            grid=(nb, nhw),
            in_specs=[pl.BlockSpec((B, C, THW), lambda n, k: (n, 0, k)),
                      const_spec(w1t), const_spec(b1),
                      const_spec(w2t), const_spec(b2)],
            out_specs=pl.BlockSpec((1, B, C), lambda n, k: (n, 0, 0)),
            scratch_shapes=[pltpu.VMEM((B, C), f32),     # sum accumulator
                            pltpu.VMEM((B, C), f32)],    # sum-of-squares accumulator
        ),
        compiler_params=pltpu.CompilerParams(
            dimension_semantics=("parallel", "arbitrary"),
            vmem_limit_bytes=48 * 1024 * 1024),
    )(fea3, w1t, b1, w2t, b2)

    return out3.reshape(N, C, 1, 1)


def coff_conv_ref(fea, params):
    """Pure-JAX reference mirroring the PyTorch forward (std = stdv_channels)."""
    w1u, b1u, w2u, b2u, w1l, b1l, w2l, b2l = params
    hp = jax.lax.Precision.HIGHEST

    def conv1x1(x, w, b):                        # x: (N, Cin, 1, 1), w: (Cout, Cin)
        y = jnp.einsum('oc,nchw->nohw', w, x, precision=hp)
        return y + b.reshape(1, -1, 1, 1)

    # upper branch
    pooled = jnp.mean(fea, axis=(2, 3), keepdims=True)       # AdaptiveAvgPool2d(1)
    u = jax.nn.relu(conv1x1(pooled, w1u, b1u))
    u = jax.nn.relu(conv1x1(u, w2u, b2u))
    upper = jax.nn.sigmoid(u)

    # lower branch: stdv_channels(fea) then SE-style convs
    mean = jnp.mean(fea, axis=(2, 3), keepdims=True)
    var = jnp.mean((fea - mean) ** 2, axis=(2, 3), keepdims=True)
    std = jnp.sqrt(var)
    l = jax.nn.relu(conv1x1(std, w1l, b1l))
    l = jax.nn.relu(conv1x1(l, w2l, b2l))
    lower = jax.nn.sigmoid(l)

    return (upper + lower) / 2


def make_params(key, num_fea, dtype=jnp.float32):
    """Weights in PyTorch conv orientation (Cout, Cin); biases as (Cout, 1)."""
    r = num_fea // 16
    assert r >= 1, "num_fea must be >= 16 (num_fea // 16 reduction)"
    ks = jax.random.split(key, 8)

    def rnd(k, shape, scale):
        return (jax.random.normal(k, shape, dtype) * scale).astype(dtype)

    return (
        rnd(ks[0], (r, num_fea), 0.1), rnd(ks[1], (r, 1), 0.01),        # upper conv1
        rnd(ks[2], (num_fea, r), 0.1), rnd(ks[3], (num_fea, 1), 0.01),  # upper conv2
        rnd(ks[4], (r, num_fea), 0.1), rnd(ks[5], (r, 1), 0.01),        # lower conv1
        rnd(ks[6], (num_fea, r), 0.1), rnd(ks[7], (num_fea, 1), 0.01),  # lower conv2
    )


if __name__ == "__main__":
    # num_fea must be >= 16 because of the num_fea // 16 bottleneck channels.
    num_fea = 64
    N, H, W = 2, 16, 16

    key = jax.random.PRNGKey(0)
    key, kx = jax.random.split(key)
    fea = jax.random.normal(kx, (N, num_fea, H, W), jnp.float32)
    params = make_params(key, num_fea)

    out = coff_conv_pallas(fea, params)
    out = jax.block_until_ready(out)

    ref = coff_conv_ref(fea, params)
    assert out.shape == (N, num_fea, 1, 1)
    max_err = float(jnp.max(jnp.abs(out - ref)))
    assert jnp.allclose(out, ref, atol=1e-4, rtol=1e-4), \
        f"mismatch vs reference, max err {max_err}"
    print("KERNEL_OK")
</pallas_src>

<mosaic_0001>
module attributes {stable_mosaic.version = 11 : i64} {
  func.func @_coff_conv_kernel(%arg0: i32, %arg1: i32, %arg2: memref<1x64x256xf32, #tpu.memory_space<vmem>>, %arg3: memref<2x64x4xf32, #tpu.memory_space<vmem>>, %arg4: memref<2x1x4xf32, #tpu.memory_space<vmem>>, %arg5: memref<2x4x64xf32, #tpu.memory_space<vmem>>, %arg6: memref<2x1x64xf32, #tpu.memory_space<vmem>>, %arg7: memref<1x1x64xf32, #tpu.memory_space<vmem>>, %arg8: memref<1x64xf32, #tpu.memory_space<vmem>>, %arg9: memref<1x64xf32, #tpu.memory_space<vmem>>) attributes {dimension_semantics = [#tpu.dimension_semantics<parallel>, #tpu.dimension_semantics<arbitrary>], iteration_bounds = array<i64: 2, 1>, scalar_prefetch = 0 : i64, scratch_operands = 2 : i64, tpu.core_type = #tpu.core_type<tc>, window_params = [{transform_indices = @transform_0, window_bounds = array<i64: 1, 64, 256>}, {pipeline_mode = #tpu.pipeline_mode<synchronous>, transform_indices = @transform_1, window_bounds = array<i64: 2, 64, 4>}, {pipeline_mode = #tpu.pipeline_mode<synchronous>, transform_indices = @transform_2, window_bounds = array<i64: 2, 1, 4>}, {pipeline_mode = #tpu.pipeline_mode<synchronous>, transform_indices = @transform_3, window_bounds = array<i64: 2, 4, 64>}, {pipeline_mode = #tpu.pipeline_mode<synchronous>, transform_indices = @transform_4, window_bounds = array<i64: 2, 1, 64>}, {transform_indices = @transform_5, window_bounds = array<i64: 1, 1, 64>}]} {
    %c0_i32 = arith.constant 0 : i32
    %0 = arith.cmpi eq, %arg1, %c0_i32 : i32
    %1 = arith.extui %0 : i1 to i32
    %c0_i32_0 = arith.constant 0 : i32
    %2 = arith.cmpi ne, %1, %c0_i32_0 : i32
    scf.if %2 {
      %cst_14 = arith.constant 0.000000e+00 : f32
      %16 = vector.broadcast %cst_14 : f32 to vector<1x64xf32>
      %c0_15 = arith.constant 0 : index
      %c0_16 = arith.constant 0 : index
      %17 = vector.load %arg8[%c0_15, %c0_16] : memref<1x64xf32, #tpu.memory_space<vmem>>, vector<1x64xf32>
      tpu.vector_store %arg8[%c0_15, %c0_16], %16 {strides = array<i32>} : memref<1x64xf32, #tpu.memory_space<vmem>>, vector<1x64xf32>,
      %cst_17 = arith.constant 0.000000e+00 : f32
      %18 = vector.broadcast %cst_17 : f32 to vector<1x64xf32>
      %c0_18 = arith.constant 0 : index
      %c0_19 = arith.constant 0 : index
      %19 = vector.load %arg9[%c0_18, %c0_19] : memref<1x64xf32, #tpu.memory_space<vmem>>, vector<1x64xf32>
      tpu.vector_store %arg9[%c0_18, %c0_19], %18 {strides = array<i32>} : memref<1x64xf32, #tpu.memory_space<vmem>>, vector<1x64xf32>,
    } else {
    }
    %c0 = arith.constant 0 : index
    %c0_1 = arith.constant 0 : index
    %c0_2 = arith.constant 0 : index
    %3 = vector.load %arg2[%c0, %c0_1, %c0_2] : memref<1x64x256xf32, #tpu.memory_space<vmem>>, vector<1x64x256xf32>
    %c0_3 = arith.constant 0 : index
    %c0_4 = arith.constant 0 : index
    %4 = vector.load %arg8[%c0_3, %c0_4] : memref<1x64xf32, #tpu.memory_space<vmem>>, vector<1x64xf32>
    %cst = arith.constant dense<0.000000e+00> : vector<1x64xf32>
    %5 = vector.multi_reduction <add>, %3, %cst [2] : vector<1x64x256xf32> to vector<1x64xf32>
    %6 = arith.addf %4, %5 : vector<1x64xf32>
    %c0_5 = arith.constant 0 : index
    %c0_6 = arith.constant 0 : index
    %7 = vector.load %arg8[%c0_5, %c0_6] : memref<1x64xf32, #tpu.memory_space<vmem>>, vector<1x64xf32>
    tpu.vector_store %arg8[%c0_5, %c0_6], %6 {strides = array<i32>} : memref<1x64xf32, #tpu.memory_space<vmem>>, vector<1x64xf32>,
    %c0_7 = arith.constant 0 : index
    %c0_8 = arith.constant 0 : index
    %8 = vector.load %arg9[%c0_7, %c0_8] : memref<1x64xf32, #tpu.memory_space<vmem>>, vector<1x64xf32>
    %9 = arith.mulf %3, %3 : vector<1x64x256xf32>
    %cst_9 = arith.constant dense<0.000000e+00> : vector<1x64xf32>
    %10 = vector.multi_reduction <add>, %9, %cst_9 [2] : vector<1x64x256xf32> to vector<1x64xf32>
    %11 = arith.addf %8, %10 : vector<1x64xf32>
    %c0_10 = arith.constant 0 : index
    %c0_11 = arith.constant 0 : index
    %12 = vector.load %arg9[%c0_10, %c0_11] : memref<1x64xf32, #tpu.memory_space<vmem>>, vector<1x64xf32>
    tpu.vector_store %arg9[%c0_10, %c0_11], %11 {strides = array<i32>} : memref<1x64xf32, #tpu.memory_space<vmem>>, vector<1x64xf32>,
    %c0_i32_12 = arith.constant 0 : i32
    %13 = arith.cmpi eq, %arg1, %c0_i32_12 : i32
    %14 = arith.extui %13 : i1 to i32
    %c0_i32_13 = arith.constant 0 : i32
    %15 = arith.cmpi ne, %14, %c0_i32_13 : i32
    scf.if %15 {
      %c0_14 = arith.constant 0 : index
      %c0_15 = arith.constant 0 : index
      %16 = vector.load %arg8[%c0_14, %c0_15] : memref<1x64xf32, #tpu.memory_space<vmem>>, vector<1x64xf32>
      %cst_16 = arith.constant 3.906250e-03 : f32
      %17 = vector.broadcast %cst_16 : f32 to vector<1x64xf32>
      %18 = arith.mulf %16, %17 : vector<1x64xf32>
      %c0_17 = arith.constant 0 : index
      %c0_18 = arith.constant 0 : index
      %19 = vector.load %arg9[%c0_17, %c0_18] : memref<1x64xf32, #tpu.memory_space<vmem>>, vector<1x64xf32>
      %cst_19 = arith.constant 3.906250e-03 : f32
      %20 = vector.broadcast %cst_19 : f32 to vector<1x64xf32>
      %21 = arith.mulf %19, %20 : vector<1x64xf32>
      %22 = arith.mulf %18, %18 : vector<1x64xf32>
      %23 = arith.subf %21, %22 : vector<1x64xf32>
      %cst_20 = arith.constant 0.000000e+00 : f32
      %24 = vector.broadcast %cst_20 : f32 to vector<1x64xf32>
      %25 = arith.maximumf %23, %24 : vector<1x64xf32>
      %26 = math.sqrt %25 : vector<1x64xf32>
      %c0_21 = arith.constant 0 : index
      %c0_22 = arith.constant 0 : index
      %c0_23 = arith.constant 0 : index
      %27 = vector.load %arg3[%c0_21, %c0_22, %c0_23] : memref<2x64x4xf32, #tpu.memory_space<vmem>>, vector<1x64x4xf32>
      %28 = vector.shape_cast %27 : vector<1x64x4xf32> to vector<64x4xf32>
      %cst_24 = arith.constant dense<0.000000e+00> : vector<1x4xf32>
      %29 = tpu.matmul %18, %28, %cst_24 {dimension_numbers = #tpu.dot_dimension_numbers<[1], [0], [0], [1], [0, 0, 1, 1], [], []>} : vector<1x64xf32>, vector<64x4xf32>, vector<1x4xf32> -> vector<1x4xf32>
      %c0_25 = arith.constant 0 : index
      %c0_26 = arith.constant 0 : index
      %c0_27 = arith.constant 0 : index
      %30 = vector.load %arg4[%c0_25, %c0_26, %c0_27] : memref<2x1x4xf32, #tpu.memory_space<vmem>>, vector<1x1x4xf32>
      %31 = vector.shape_cast %30 : vector<1x1x4xf32> to vector<1x4xf32>
      %32 = arith.addf %29, %31 : vector<1x4xf32>
      %cst_28 = arith.constant 0.000000e+00 : f32
      %33 = vector.broadcast %cst_28 : f32 to vector<1x4xf32>
      %34 = arith.maximumf %32, %33 : vector<1x4xf32>
      %c0_29 = arith.constant 0 : index
      %c0_30 = arith.constant 0 : index
      %c0_31 = arith.constant 0 : index
      %35 = vector.load %arg5[%c0_29, %c0_30, %c0_31] : memref<2x4x64xf32, #tpu.memory_space<vmem>>, vector<1x4x64xf32>
      %36 = vector.shape_cast %35 : vector<1x4x64xf32> to vector<4x64xf32>
      %cst_32 = arith.constant dense<0.000000e+00> : vector<1x64xf32>
      %37 = tpu.matmul %34, %36, %cst_32 {dimension_numbers = #tpu.dot_dimension_numbers<[1], [0], [0], [1], [0, 0, 1, 1], [], []>} : vector<1x4xf32>, vector<4x64xf32>, vector<1x64xf32> -> vector<1x64xf32>
      %c0_33 = arith.constant 0 : index
      %c0_34 = arith.constant 0 : index
      %c0_35 = arith.constant 0 : index
      %38 = vector.load %arg6[%c0_33, %c0_34, %c0_35] : memref<2x1x64xf32, #tpu.memory_space<vmem>>, vector<1x1x64xf32>
      %39 = vector.shape_cast %38 : vector<1x1x64xf32> to vector<1x64xf32>
      %40 = arith.addf %37, %39 : vector<1x64xf32>
      %cst_36 = arith.constant 0.000000e+00 : f32
      %41 = vector.broadcast %cst_36 : f32 to vector<1x64xf32>
      %42 = arith.maximumf %40, %41 : vector<1x64xf32>
      %cst_37 = arith.constant 0.000000e+00 : f32
      %43 = vector.broadcast %cst_37 : f32 to vector<1x64xf32>
      %44 = arith.subf %43, %42 : vector<1x64xf32>
      %45 = math.exp %44 : vector<1x64xf32>
      %cst_38 = arith.constant 1.000000e+00 : f32
      %46 = vector.broadcast %cst_38 : f32 to vector<1x64xf32>
      %47 = arith.addf %46, %45 : vector<1x64xf32>
      %cst_39 = arith.constant 1.000000e+00 : f32
      %48 = vector.broadcast %cst_39 : f32 to vector<1x64xf32>
      %49 = arith.divf %48, %47 : vector<1x64xf32>
      %c1 = arith.constant 1 : index
      %c0_40 = arith.constant 0 : index
      %c0_41 = arith.constant 0 : index
      %50 = vector.load %arg3[%c1, %c0_40, %c0_41] : memref<2x64x4xf32, #tpu.memory_space<vmem>>, vector<1x64x4xf32>
      %51 = vector.shape_cast %50 : vector<1x64x4xf32> to vector<64x4xf32>
      %cst_42 = arith.constant dense<0.000000e+00> : vector<1x4xf32>
      %52 = tpu.matmul %26, %51, %cst_42 {dimension_numbers = #tpu.dot_dimension_numbers<[1], [0], [0], [1], [0, 0, 1, 1], [], []>} : vector<1x64xf32>, vector<64x4xf32>, vector<1x4xf32> -> vector<1x4xf32>
      %c1_43 = arith.constant 1 : index
      %c0_44 = arith.constant 0 : index
      %c0_45 = arith.constant 0 : index
      %53 = vector.load %arg4[%c1_43, %c0_44, %c0_45] : memref<2x1x4xf32, #tpu.memory_space<vmem>>, vector<1x1x4xf32>
      %54 = vector.shape_cast %53 : vector<1x1x4xf32> to vector<1x4xf32>
      %55 = arith.addf %52, %54 : vector<1x4xf32>
      %cst_46 = arith.constant 0.000000e+00 : f32
      %56 = vector.broadcast %cst_46 : f32 to vector<1x4xf32>
      %57 = arith.maximumf %55, %56 : vector<1x4xf32>
      %c1_47 = arith.constant 1 : index
      %c0_48 = arith.constant 0 : index
      %c0_49 = arith.constant 0 : index
      %58 = vector.load %arg5[%c1_47, %c0_48, %c0_49] : memref<2x4x64xf32, #tpu.memory_space<vmem>>, vector<1x4x64xf32>
      %59 = vector.shape_cast %58 : vector<1x4x64xf32> to vector<4x64xf32>
      %cst_50 = arith.constant dense<0.000000e+00> : vector<1x64xf32>
      %60 = tpu.matmul %57, %59, %cst_50 {dimension_numbers = #tpu.dot_dimension_numbers<[1], [0], [0], [1], [0, 0, 1, 1], [], []>} : vector<1x4xf32>, vector<4x64xf32>, vector<1x64xf32> -> vector<1x64xf32>
      %c1_51 = arith.constant 1 : index
      %c0_52 = arith.constant 0 : index
      %c0_53 = arith.constant 0 : index
      %61 = vector.load %arg6[%c1_51, %c0_52, %c0_53] : memref<2x1x64xf32, #tpu.memory_space<vmem>>, vector<1x1x64xf32>
      %62 = vector.shape_cast %61 : vector<1x1x64xf32> to vector<1x64xf32>
      %63 = arith.addf %60, %62 : vector<1x64xf32>
      %cst_54 = arith.constant 0.000000e+00 : f32
      %64 = vector.broadcast %cst_54 : f32 to vector<1x64xf32>
      %65 = arith.maximumf %63, %64 : vector<1x64xf32>
      %cst_55 = arith.constant 0.000000e+00 : f32
      %66 = vector.broadcast %cst_55 : f32 to vector<1x64xf32>
      %67 = arith.subf %66, %65 : vector<1x64xf32>
      %68 = math.exp %67 : vector<1x64xf32>
      %cst_56 = arith.constant 1.000000e+00 : f32
      %69 = vector.broadcast %cst_56 : f32 to vector<1x64xf32>
      %70 = arith.addf %69, %68 : vector<1x64xf32>
      %cst_57 = arith.constant 1.000000e+00 : f32
      %71 = vector.broadcast %cst_57 : f32 to vector<1x64xf32>
      %72 = arith.divf %71, %70 : vector<1x64xf32>
      %73 = arith.addf %49, %72 : vector<1x64xf32>
      %cst_58 = arith.constant 5.000000e-01 : f32
      %74 = vector.broadcast %cst_58 : f32 to vector<1x64xf32>
      %75 = arith.mulf %73, %74 : vector<1x64xf32>
      %76 = vector.shape_cast %75 : vector<1x64xf32> to vector<1x1x64xf32>
      %c0_59 = arith.constant 0 : index
      %c0_60 = arith.constant 0 : index
      %c0_61 = arith.constant 0 : index
      %77 = vector.load %arg7[%c0_59, %c0_60, %c0_61] : memref<1x1x64xf32, #tpu.memory_space<vmem>>, vector<1x1x64xf32>
      tpu.vector_store %arg7[%c0_59, %c0_60, %c0_61], %76 {strides = array<i32>} : memref<1x1x64xf32, #tpu.memory_space<vmem>>, vector<1x1x64xf32>,
    } else {
    }
    return
  }
  func.func @transform_0(%arg0: i32, %arg1: i32) -> (i32, i32, i32) {
    %c0_i32 = arith.constant 0 : i32
    %c0_i32_0 = arith.constant 0 : i32
    return %arg0, %c0_i32, %arg1 : i32, i32, i32
  }
  func.func @transform_1(%arg0: i32, %arg1: i32) -> (i32, i32, i32) {
    %c0_i32 = arith.constant 0 : i32
    %c0_i32_0 = arith.constant 0 : i32
    %c0_i32_1 = arith.constant 0 : i32
    %c0_i32_2 = arith.constant 0 : i32
    return %c0_i32, %c0_i32_0, %c0_i32_1 : i32, i32, i32
  }
  func.func @transform_2(%arg0: i32, %arg1: i32) -> (i32, i32, i32) {
    %c0_i32 = arith.constant 0 : i32
    %c0_i32_0 = arith.constant 0 : i32
    %c0_i32_1 = arith.constant 0 : i32
    %c0_i32_2 = arith.constant 0 : i32
    return %c0_i32, %c0_i32_0, %c0_i32_1 : i32, i32, i32
  }
  func.func @transform_3(%arg0: i32, %arg1: i32) -> (i32, i32, i32) {
    %c0_i32 = arith.constant 0 : i32
    %c0_i32_0 = arith.constant 0 : i32
    %c0_i32_1 = arith.constant 0 : i32
    %c0_i32_2 = arith.constant 0 : i32
    return %c0_i32, %c0_i32_0, %c0_i32_1 : i32, i32, i32
  }
  func.func @transform_4(%arg0: i32, %arg1: i32) -> (i32, i32, i32) {
    %c0_i32 = arith.constant 0 : i32
    %c0_i32_0 = arith.constant 0 : i32
    %c0_i32_1 = arith.constant 0 : i32
    %c0_i32_2 = arith.constant 0 : i32
    return %c0_i32, %c0_i32_0, %c0_i32_1 : i32, i32, i32
  }
  func.func @transform_5(%arg0: i32, %arg1: i32) -> (i32, i32, i32) {
    %c0_i32 = arith.constant 0 : i32
    %c0_i32_0 = arith.constant 0 : i32
    %c0_i32_1 = arith.constant 0 : i32
    return %arg0, %c0_i32, %c0_i32_0 : i32, i32, i32
  }
}

</mosaic_0001>

<llo_original>
// kernel: tpu_custom_call.1
$region0: #{tpu_custom_call.1}
  #allocation0 [shape = 'u32[]', space=smem, size = 0x4, offset = 0x4, fixed_abs, tag = 'smem constant byte address 0x4 - core index']
  #allocation1 [shape = 'u32[144,128]{1,0:T(1,128)}', space=vmem, size = 0x12000, scoped, tag = 'internal scratch']
  #allocation2 [shape = 'f32[1,64]{1,0:T(1,128)}', space=vmem, size = 0x200, scoped, tag = 'scratch operand']
  #allocation3 [shape = 'f32[1,64]{1,0:T(1,128)}', space=vmem, size = 0x200, scoped, tag = 'scratch operand']
  %s0 = inlined_call_operand.hbm [shape: f32[2,64,256], index: 0, kind: input, shape index: {}]
  %s1 = inlined_call_operand.vmem [shape: f32[2,64,4], index: 1, kind: input, shape index: {}]
  %s2 = inlined_call_operand.vmem [shape: f32[2,1,4], index: 2, kind: input, shape index: {}]
  %s3 = inlined_call_operand.vmem [shape: f32[2,4,64], index: 3, kind: input, shape index: {}]
  %s4 = inlined_call_operand.vmem [shape: f32[2,1,64], index: 4, kind: input, shape index: {}]
  %s5 = inlined_call_operand.hbm [shape: f32[2,1,64], index: 5, kind: output, shape index: {}]
  %s6 = sld [smem:[#allocation0]]
  $region65: #{tpu_custom_call.1} parent=0
    _
  %s8 = ssub.s32 1, %s6
  %s9 = scalar_select 0, %s8, %s6
  $region1: #{tpu_custom_call.1} parent=0
    #allocation4 [shape = 'u8[131072]{0}', space=vmem, size = 0x20000, scoped, tag = 'input window, operand 0']
    #allocation5 [shape = 's32[2]{0}', space=sflag, size = 0x8, scoped, tag = 'scoped memory for tpu_custom_call.1']
    #allocation6 [shape = 's32[2]{0}', space=sflag, size = 0x8, scoped, tag = 'scoped memory for tpu_custom_call.1']
    #allocation7 [shape = 'u8[1024]{0}', space=vmem, size = 0x400, scoped, tag = 'output window, operand 0']
    %10 = vsyncpa [#allocation5], 0
    %s11 = scalar_lea.sflag [#allocation5], 1
    %12 = vsyncpa %s11, 0
    %13 = vsyncpa [#allocation6], 0
    %s14 = scalar_lea.sflag [#allocation6], 1
    %15 = vsyncpa %s14, 0
    loop: start=0, step=1, limit=4
    $region2: #{tpu_custom_call.1} parent=1 // loop_pre_header
      _
    $region3: #{tpu_custom_call.1} parent=1 // loop_header
      %s17 = sphi 0, %s21
      %p18 = scmp.ge.s32.totalorder %s17, 4
      %s24 = sphi 0, %s36
      %s25 = sphi 0, %s32
      %s26 = sphi 0, %s24
      %s27 = sphi 0, %s25
      %s28 = sphi 0, %s26
      %s29 = sphi 0, %s27
      %s41 = sphi 0, %s43
      %s44 = sphi 0, %s41
      %s45 = sphi 0, %s44
      %s61 = sphi 0, %s45
      %s65 = sphi 0, %s65
      %s67 = sphi 0, %s65
      %s68 = sphi 0, %s67
      %s82 = sphi 0, %s68
      %s86 = sphi 0, %s86
      %s88 = sphi 0, %s86
      %s89 = sphi 0, %s88
      %s103 = sphi 0, %s89
      %s107 = sphi 0, %s107
      %s109 = sphi 0, %s107
      %s110 = sphi 0, %s109
      %s124 = sphi 0, %s110
      %s128 = sphi 0, %s128
      %s130 = sphi 0, %s128
      %s131 = sphi 0, %s130
      %s145 = sphi 0, %s131
      %s151 = sphi 0, %s153
      %s154 = sphi 0, %s151
      %s155 = sphi 0, %s154
      %s171 = sphi 0, %s155
    $region4: #{tpu_custom_call.1} parent=1 // loop_header_branch
      %20 = sbr.rel (%p18) target = $region8
    $region5: #{tpu_custom_call.1} parent=1 // loop_body
      %s22 = ssub.s32 %s17, 1
      %s23 = ssub.s32 %s17, 2
      %s30 = sadd.s32 1, %s25
      %p31 = scmp.ge.s32.totalorder %s30, 1
      %s32 = scalar_select %p31, 0, %s30
      %s33 = sadd.s32 1, %s24
      %s34 = scalar_select %p31, %s33, %s24
      %p35 = scmp.ge.s32.totalorder %s34, 2
      %s36 = scalar_select %p35, 0, %s34
      %s37 = ssub.s32 %s24, %s36
      %s38 = ssub.s32 %s25, %s32
      %s39 = sor.u32 %s37, %s38
      %p40 = scmp.eq.s32.totalorder %s39, 0
      %s42 = sadd.s32 %s41, 1
      %s43 = scalar_select %p40, %s41, %s42
      %p46 = pneg %p40
      %p47 = scmp.eq.s32.totalorder %s17, 1
      %p48 = por %p46, %p47
      %p49 = scmp.ne.s32.totalorder %s41, %s44
      %p50 = scmp.eq.s32.totalorder %s17, 0
      %p51 = por %p49, %p50
      %p52 = scmp.ne.s32.totalorder %s41, %s44
      %p53 = scmp.eq.s32.totalorder %s22, 1
      %p54 = por %p52, %p53
      %p55 = scmp.ne.s32.totalorder %s44, %s45
      %p56 = scmp.eq.s32.totalorder %s22, 0
      %p57 = por %p55, %p56
      %p58 = scmp.ne.s32.totalorder %s44, %s45
      %p59 = scmp.eq.s32.totalorder %s23, 1
      %p60 = por %p58, %p59
      %p62 = scmp.ne.s32.totalorder %s45, %s61
      %p63 = scmp.eq.s32.totalorder %s23, 0
      %p64 = por %p62, %p63
      %s66 = sadd.s32 %s65, 1
      %p69 = scmp.eq.s32.totalorder %s17, 1
      %p70 = scmp.ne.s32.totalorder %s65, %s67
      %p71 = scmp.eq.s32.totalorder %s17, 0
      %p72 = por %p70, %p71
      %p73 = scmp.ne.s32.totalorder %s65, %s67
      %p74 = scmp.eq.s32.totalorder %s22, 1
      %p75 = por %p73, %p74
      %p76 = scmp.ne.s32.totalorder %s67, %s68
      %p77 = scmp.eq.s32.totalorder %s22, 0
      %p78 = por %p76, %p77
      %p79 = scmp.ne.s32.totalorder %s67, %s68
      %p80 = scmp.eq.s32.totalorder %s23, 1
      %p81 = por %p79, %p80
      %p83 = scmp.ne.s32.totalorder %s68, %s82
      %p84 = scmp.eq.s32.totalorder %s23, 0
      %p85 = por %p83, %p84
      %s87 = sadd.s32 %s86, 1
      %p90 = scmp.eq.s32.totalorder %s17, 1
      %p91 = scmp.ne.s32.totalorder %s86, %s88
      %p92 = scmp.eq.s32.totalorder %s17, 0
      %p93 = por %p91, %p92
      %p94 = scmp.ne.s32.totalorder %s86, %s88
      %p95 = scmp.eq.s32.totalorder %s22, 1
      %p96 = por %p94, %p95
      %p97 = scmp.ne.s32.totalorder %s88, %s89
      %p98 = scmp.eq.s32.totalorder %s22, 0
      %p99 = por %p97, %p98
      %p100 = scmp.ne.s32.totalorder %s88, %s89
      %p101 = scmp.eq.s32.totalorder %s23, 1
      %p102 = por %p100, %p101
      %p104 = scmp.ne.s32.totalorder %s89, %s103
      %p105 = scmp.eq.s32.totalorder %s23, 0
      %p106 = por %p104, %p105
      %s108 = sadd.s32 %s107, 1
      %p111 = scmp.eq.s32.totalorder %s17, 1
      %p112 = scmp.ne.s32.totalorder %s107, %s109
      %p113 = scmp.eq.s32.totalorder %s17, 0
      %p114 = por %p112, %p113
      %p115 = scmp.ne.s32.totalorder %s107, %s109
      %p116 = scmp.eq.s32.totalorder %s22, 1
      %p117 = por %p115, %p116
      %p118 = scmp.ne.s32.totalorder %s109, %s110
      %p119 = scmp.eq.s32.totalorder %s22, 0
      %p120 = por %p118, %p119
      %p121 = scmp.ne.s32.totalorder %s109, %s110
      %p122 = scmp.eq.s32.totalorder %s23, 1
      %p123 = por %p121, %p122
      %p125 = scmp.ne.s32.totalorder %s110, %s124
      %p126 = scmp.eq.s32.totalorder %s23, 0
      %p127 = por %p125, %p126
      %s129 = sadd.s32 %s128, 1
      %p132 = scmp.eq.s32.totalorder %s17, 1
      %p133 = scmp.ne.s32.totalorder %s128, %s130
      %p134 = scmp.eq.s32.totalorder %s17, 0
      %p135 = por %p133, %p134
      %p136 = scmp.ne.s32.totalorder %s128, %s130
      %p137 = scmp.eq.s32.totalorder %s22, 1
      %p138 = por %p136, %p137
      %p139 = scmp.ne.s32.totalorder %s130, %s131
      %p140 = scmp.eq.s32.totalorder %s22, 0
      %p141 = por %p139, %p140
      %p142 = scmp.ne.s32.totalorder %s130, %s131
      %p143 = scmp.eq.s32.totalorder %s23, 1
      %p144 = por %p142, %p143
      %p146 = scmp.ne.s32.totalorder %s131, %s145
      %p147 = scmp.eq.s32.totalorder %s23, 0
      %p148 = por %p146, %p147
      %s149 = ssub.s32 %s24, %s36
      %p150 = scmp.eq.s32.totalorder %s149, 0
      %s152 = sadd.s32 %s151, 1
      %s153 = scalar_select %p150, %s151, %s152
      %p156 = pneg %p150
      %p157 = scmp.eq.s32.totalorder %s17, 1
      %p158 = por %p156, %p157
      %p159 = scmp.ne.s32.totalorder %s151, %s154
      %p160 = scmp.eq.s32.totalorder %s17, 0
      %p161 = por %p159, %p160
      %p162 = scmp.ne.s32.totalorder %s151, %s154
      %p163 = scmp.eq.s32.totalorder %s22, 1
      %p164 = por %p162, %p163
      %p165 = scmp.ne.s32.totalorder %s154, %s155
      %p166 = scmp.eq.s32.totalorder %s22, 0
      %p167 = por %p165, %p166
      %p168 = scmp.ne.s32.totalorder %s154, %s155
      %p169 = scmp.eq.s32.totalorder %s23, 1
      %p170 = por %p168, %p169
      %p172 = scmp.ne.s32.totalorder %s155, %s171
      %p173 = scmp.eq.s32.totalorder %s23, 0
      %p174 = por %p172, %p173
      %p175 = scmp.le.s32.totalorder 1, %s17
      %p176 = scmp.lt.s32.totalorder %s17, 3
      %p177 = pnand %p175, %p176
      %p178 = pneg %p177
      // Predicated region
      $region9: #{tpu_custom_call.1} parent=5 // pred_check
        _
      $region10: #{tpu_custom_call.1} parent=5 // pred_check_branch
        %180 = sbr.rel (%p177) target = $region12
      $region11: #{tpu_custom_call.1} parent=5 // pred_region
        %s181 = ssub.s32 %s17, 1
        // Predicated region
        $region13: #{tpu_custom_call.1} parent=11 // pred_check
          %p182 = pneg %p78
        $region14: #{tpu_custom_call.1} parent=11 // pred_check_branch
          %184 = sbr.rel (%p182) target = $region16
        $region15: #{tpu_custom_call.1} parent=11 // pred_region
          _
        $region16: #{tpu_custom_call.1} parent=11 // pred_fallthru
          _
        // Predicated region
        $region17: #{tpu_custom_call.1} parent=11 // pred_check
          %p185 = pneg %p99
        $region18: #{tpu_custom_call.1} parent=11 // pred_check_branch
          %187 = sbr.rel (%p185) target = $region20
        $region19: #{tpu_custom_call.1} parent=11 // pred_region
          _
        $region20: #{tpu_custom_call.1} parent=11 // pred_fallthru
          _
        // Predicated region
        $region21: #{tpu_custom_call.1} parent=11 // pred_check
          %p188 = pneg %p120
        $region22: #{tpu_custom_call.1} parent=11 // pred_check_branch
          %190 = sbr.rel (%p188) target = $region24
        $region23: #{tpu_custom_call.1} parent=11 // pred_region
          _
        $region24: #{tpu_custom_call.1} parent=11 // pred_fallthru
          _
        // Predicated region
        $region25: #{tpu_custom_call.1} parent=11 // pred_check
          %p191 = pneg %p141
        $region26: #{tpu_custom_call.1} parent=11 // pred_check_branch
          %193 = sbr.rel (%p191) target = $region28
        $region27: #{tpu_custom_call.1} parent=11 // pred_region
          _
        $region28: #{tpu_custom_call.1} parent=11 // pred_fallthru
          _
      $region12: #{tpu_custom_call.1} parent=5 // pred_fallthru
        _
      %p194 = scmp.lt.s32.totalorder %s17, 2
      // Predicated region
      $region29: #{tpu_custom_call.1} parent=5 // pred_check
        %p195 = pneg %p194
      $region30: #{tpu_custom_call.1} parent=5 // pred_check_branch
        %197 = sbr.rel (%p195) target = $region32
      $region31: #{tpu_custom_call.1} parent=5 // pred_region
        // Predicated region
        $region33: #{tpu_custom_call.1} parent=31 // pred_check
          %p198 = pneg %p51
        $region34: #{tpu_custom_call.1} parent=31 // pred_check_branch
          %200 = sbr.rel (%p198) target = $region36
        $region35: #{tpu_custom_call.1} parent=31 // pred_region
          %s201 = sand.u32 %s41, 1
          %s202 = scalar_lea.sflag [#allocation5], %s201
          %s203 = sand.u32 %s41, 1
          %s204 = smul.addr %s203, 128
          %s205 = scalar_lea.vmem [#allocation4], %s204
          %s206 = smul.u32 2, %s25
          %s208 = ssub.s32 2048, 2048
          %209 = vsyncadd %s202, %s208
          %s210 = smul.addr %s24, 16
          %s211 = sadd.s32 %s206, %s210
          %s212 = smul.addr %s211, 128
          %s213 = scalar_lea.hbm %s0, %s212
          %s214 = sshll.u32 %s205, 4
          %s215 = int_to_ptr.vmem [resolvable:$true] %s214
          %220 = dma.hbm_to_vmem [thread:$0]  %s213, 2048, %s215, %s202, 256, 256, 16
        $region36: #{tpu_custom_call.1} parent=31 // pred_fallthru
          _
      $region32: #{tpu_custom_call.1} parent=5 // pred_fallthru
        _
      %p221 = scmp.le.s32.totalorder 1, %s17
      %p222 = scmp.lt.s32.totalorder %s17, 3
      %p223 = pnand %p221, %p222
      %p224 = pneg %p223
      // Predicated region
      $region37: #{tpu_custom_call.1} parent=5 // pred_check
        _
      $region38: #{tpu_custom_call.1} parent=5 // pred_check_branch
        %226 = sbr.rel (%p223) target = $region40
      $region39: #{tpu_custom_call.1} parent=5 // pred_region
        %s227 = ssub.s32 %s17, 1
        %s228 = sand.u32 %s44, 1
        %s229 = scalar_lea.sflag [#allocation5], %s228
        %s230 = sand.u32 %s44, 1
        %s231 = smul.addr %s230, 128
        %s232 = scalar_lea.vmem [#allocation4], %s231
        // Predicated region
        $region41: #{tpu_custom_call.1} parent=39 // pred_check
          %p233 = pneg %p57
        $region42: #{tpu_custom_call.1} parent=39 // pred_check_branch
          %235 = sbr.rel (%p233) target = $region44
        $region43: #{tpu_custom_call.1} parent=39 // pred_region
          %236 = dma.done %s229, 2048
        $region44: #{tpu_custom_call.1} parent=39 // pred_fallthru
          _
        %s237 = sand.u32 %s44, 1
        %s238 = scalar_lea.sflag [#allocation5], %s237
        %s239 = sand.u32 %s44, 1
        %s240 = smul.addr %s239, 128
        %s241 = scalar_lea.vmem [#allocation4], %s240
        %p242 = pneg %p57
        %p243 = pneg %p54
        %p244 = pneg %p78
        %p245 = pneg %p75
        %p246 = pneg %p99
        %p247 = pneg %p96
        %p248 = pneg %p120
        %p249 = pneg %p117
        %p250 = pneg %p141
        %p251 = pneg %p138
        %p252 = pneg %p167
        %p253 = pneg %p164
        %s254 = sand.u32 %s154, 1
        %s255 = scalar_lea.sflag [#allocation6], %s254
        %s256 = sand.u32 %s154, 1
        %s257 = scalar_lea.vmem [#allocation7], %s256
        %s258 = smul.u32 2, %s27
        %p259 = scmp.eq.s32.totalorder %s27, 0
        // Predicated region
        $region45: #{tpu_custom_call.1} parent=39 // pred_check
          %p260 = pneg %p259
        $region46: #{tpu_custom_call.1} parent=39 // pred_check_branch
          %262 = sbr.rel (%p260) target = $region48
        $region47: #{tpu_custom_call.1} parent=39 // pred_region
          %vm263 = vcmask 516096
          %264 = vst.msk [vmem:[#allocation2] sm:$0x1] %vm263, 0.0
          %265 = vst.msk [vmem:[#allocation3] sm:$0x1] %vm263, 0.0
        $region48: #{tpu_custom_call.1} parent=39 // pred_fallthru
          _
        %v266 = vld [vmem:[%s232] sm:$0xff]
        %v267 = vld [vmem:[%s232 + $0x8] sm:$0xff]
        %v268 = vld [vmem:[%s232 + $0x10] sm:$0xff]
        %v269 = vld [vmem:[%s232 + $0x18] sm:$0xff]
        %v270 = vld [vmem:[%s232 + $0x20] sm:$0xff]
        %v271 = vld [vmem:[%s232 + $0x28] sm:$0xff]
        %v272 = vld [vmem:[%s232 + $0x30] sm:$0xff]
        %v273 = vld [vmem:[%s232 + $0x38] sm:$0xff]
        %v274 = vld [vmem:[%s232 + $0x40] sm:$0xff]
        %v275 = vld [vmem:[%s232 + $0x48] sm:$0xff]
        %v276 = vld [vmem:[%s232 + $0x50] sm:$0xff]
        %v277 = vld [vmem:[%s232 + $0x58] sm:$0xff]
        %v278 = vld [vmem:[%s232 + $0x60] sm:$0xff]
        %v279 = vld [vmem:[%s232 + $0x68] sm:$0xff]
        %v280 = vld [vmem:[%s232 + $0x70] sm:$0xff]
        %v281 = vld [vmem:[%s232 + $0x78] sm:$0xff]
        %v282 = vld [vmem:[#allocation2] sm:$0x1]
        %v283 = vadd.f32 %v266, %v267
        %284 = vadd.xlane.f32.xlu0 %v283
        %v285 = vpop.xlane.xlu0 %284
        %v286 = vadd.f32 %v268, %v269
        %287 = vadd.xlane.f32.xlu0 %v286
        %v288 = vpop.xlane.xlu0 %287
        %v289 = vadd.f32 %v270, %v271
        %290 = vadd.xlane.f32.xlu0 %v289
        %v291 = vpop.xlane.xlu0 %290
        %v292 = vadd.f32 %v272, %v273
        %293 = vadd.xlane.f32.xlu0 %v292
        %v294 = vpop.xlane.xlu0 %293
        %v295 = vadd.f32 %v274, %v275
        %296 = vadd.xlane.f32.xlu0 %v295
        %v297 = vpop.xlane.xlu0 %296
        %v298 = vadd.f32 %v276, %v277
        %299 = vadd.xlane.f32.xlu0 %v298
        %v300 = vpop.xlane.xlu0 %299
        %v301 = vadd.f32 %v278, %v279
        %302 = vadd.xlane.f32.xlu0 %v301
        %v303 = vpop.xlane.xlu0 %302
        %v304 = vadd.f32 %v280, %v281
        %305 = vadd.xlane.f32.xlu0 %v304
        %v306 = vpop.xlane.xlu0 %305
        %v315 = vlaneseq
        %v316 = vshrl.u32 %v315, 7
        %v317 = vsub.s32 0, %v316
        %v318 = vrot.slane %v285, %v317
        %v319 = vlaneseq
        %v320 = vshrl.u32 %v319, 7
        %v321 = vsub.s32 1, %v320
        %v322 = vrot.slane %v285, %v321
        %v323 = vlaneseq
        %v324 = vshrl.u32 %v323, 7
        %v325 = vsub.s32 2, %v324
        %v326 = vrot.slane %v285, %v325
        %v327 = vlaneseq
        %v328 = vshrl.u32 %v327, 7
        %v329 = vsub.s32 3, %v328
        %v330 = vrot.slane %v285, %v329
        %v331 = vlaneseq
        %v332 = vshrl.u32 %v331, 7
        %v333 = vsub.s32 4, %v332
        %v334 = vrot.slane %v285, %v333
        %v335 = vlaneseq
        %v336 = vshrl.u32 %v335, 7
        %v337 = vsub.s32 5, %v336
        %v338 = vrot.slane %v285, %v337
        %v339 = vlaneseq
        %v340 = vshrl.u32 %v339, 7
        %v341 = vsub.s32 6, %v340
        %v342 = vrot.slane %v285, %v341
        %v343 = vlaneseq
        %v344 = vshrl.u32 %v343, 7
        %v345 = vsub.s32 7, %v344
        %v346 = vrot.slane %v285, %v345
        %v347 = vlaneseq
        %v348 = vshrl.u32 %v347, 7
        %v349 = vsub.s32 0, %v348
        %v350 = vrot.slane %v288, %v349
        %v351 = vlaneseq
        %v352 = vshrl.u32 %v351, 7
        %v353 = vsub.s32 1, %v352
        %v354 = vrot.slane %v288, %v353
        %v355 = vlaneseq
        %v356 = vshrl.u32 %v355, 7
        %v357 = vsub.s32 2, %v356
        %v358 = vrot.slane %v288, %v357
        %v359 = vlaneseq
        %v360 = vshrl.u32 %v359, 7
        %v361 = vsub.s32 3, %v360
        %v362 = vrot.slane %v288, %v361
        %v363 = vlaneseq
        %v364 = vshrl.u32 %v363, 7
        %v365 = vsub.s32 4, %v364
        %v366 = vrot.slane %v288, %v365
        %v367 = vlaneseq
        %v368 = vshrl.u32 %v367, 7
        %v369 = vsub.s32 5, %v368
        %v370 = vrot.slane %v288, %v369
        %v371 = vlaneseq
        %v372 = vshrl.u32 %v371, 7
        %v373 = vsub.s32 6, %v372
        %v374 = vrot.slane %v288, %v373
        %v375 = vlaneseq
        %v376 = vshrl.u32 %v375, 7
        %v377 = vsub.s32 7, %v376
        %v378 = vrot.slane %v288, %v377
        %v379 = vlaneseq
        %v380 = vshrl.u32 %v379, 7
        %v381 = vsub.s32 0, %v380
        %v382 = vrot.slane %v291, %v381
        %v383 = vlaneseq
        %v384 = vshrl.u32 %v383, 7
        %v385 = vsub.s32 1, %v384
        %v386 = vrot.slane %v291, %v385
        %v387 = vlaneseq
        %v388 = vshrl.u32 %v387, 7
        %v389 = vsub.s32 2, %v388
        %v390 = vrot.slane %v291, %v389
        %v391 = vlaneseq
        %v392 = vshrl.u32 %v391, 7
        %v393 = vsub.s32 3, %v392
        %v394 = vrot.slane %v291, %v393
        %v395 = vlaneseq
        %v396 = vshrl.u32 %v395, 7
        %v397 = vsub.s32 4, %v396
        %v398 = vrot.slane %v291, %v397
        %v399 = vlaneseq
        %v400 = vshrl.u32 %v399, 7
        %v401 = vsub.s32 5, %v400
        %v402 = vrot.slane %v291, %v401
        %v403 = vlaneseq
        %v404 = vshrl.u32 %v403, 7
        %v405 = vsub.s32 6, %v404
        %v406 = vrot.slane %v291, %v405
        %v407 = vlaneseq
        %v408 = vshrl.u32 %v407, 7
        %v409 = vsub.s32 7, %v408
        %v410 = vrot.slane %v291, %v409
        %v411 = vlaneseq
        %v412 = vshrl.u32 %v411, 7
        %v413 = vsub.s32 0, %v412
        %v414 = vrot.slane %v294, %v413
        %v415 = vlaneseq
        %v416 = vshrl.u32 %v415, 7
        %v417 = vsub.s32 1, %v416
        %v418 = vrot.slane %v294, %v417
        %v419 = vlaneseq
        %v420 = vshrl.u32 %v419, 7
        %v421 = vsub.s32 2, %v420
        %v422 = vrot.slane %v294, %v421
        %v423 = vlaneseq
        %v424 = vshrl.u32 %v423, 7
        %v425 = vsub.s32 3, %v424
        %v426 = vrot.slane %v294, %v425
        %v427 = vlaneseq
        %v428 = vshrl.u32 %v427, 7
        %v429 = vsub.s32 4, %v428
        %v430 = vrot.slane %v294, %v429
        %v431 = vlaneseq
        %v432 = vshrl.u32 %v431, 7
        %v433 = vsub.s32 5, %v432
        %v434 = vrot.slane %v294, %v433
        %v435 = vlaneseq
        %v436 = vshrl.u32 %v435, 7
        %v437 = vsub.s32 6, %v436
        %v438 = vrot.slane %v294, %v437
        %v439 = vlaneseq
        %v440 = vshrl.u32 %v439, 7
        %v441 = vsub.s32 7, %v440
        %v442 = vrot.slane %v294, %v441
        %v443 = vlaneseq
        %v444 = vshrl.u32 %v443, 7
        %v445 = vsub.s32 0, %v444
        %v446 = vrot.slane %v297, %v445
        %v447 = vlaneseq
        %v448 = vshrl.u32 %v447, 7
        %v449 = vsub.s32 1, %v448
        %v450 = vrot.slane %v297, %v449
        %v451 = vlaneseq
        %v452 = vshrl.u32 %v451, 7
        %v453 = vsub.s32 2, %v452
        %v454 = vrot.slane %v297, %v453
        %v455 = vlaneseq
        %v456 = vshrl.u32 %v455, 7
        %v457 = vsub.s32 3, %v456
        %v458 = vrot.slane %v297, %v457
        %v459 = vlaneseq
        %v460 = vshrl.u32 %v459, 7
        %v461 = vsub.s32 4, %v460
        %v462 = vrot.slane %v297, %v461
        %v463 = vlaneseq
        %v464 = vshrl.u32 %v463, 7
        %v465 = vsub.s32 5, %v464
        %v466 = vrot.slane %v297, %v465
        %v467 = vlaneseq
        %v468 = vshrl.u32 %v467, 7
        %v469 = vsub.s32 6, %v468
        %v470 = vrot.slane %v297, %v469
        %v471 = vlaneseq
        %v472 = vshrl.u32 %v471, 7
        %v473 = vsub.s32 7, %v472
        %v474 = vrot.slane %v297, %v473
        %v475 = vlaneseq
        %v476 = vshrl.u32 %v475, 7
        %v477 = vsub.s32 0, %v476
        %v478 = vrot.slane %v300, %v477
        %v479 = vlaneseq
        %v480 = vshrl.u32 %v479, 7
        %v481 = vsub.s32 1, %v480
        %v482 = vrot.slane %v300, %v481
        %v483 = vlaneseq
        %v484 = vshrl.u32 %v483, 7
        %v485 = vsub.s32 2, %v484
        %v486 = vrot.slane %v300, %v485
        %v487 = vlaneseq
        %v488 = vshrl.u32 %v487, 7
        %v489 = vsub.s32 3, %v488
        %v490 = vrot.slane %v300, %v489
        %v491 = vlaneseq
        %v492 = vshrl.u32 %v491, 7
        %v493 = vsub.s32 4, %v492
        %v494 = vrot.slane %v300, %v493
        %v495 = vlaneseq
        %v496 = vshrl.u32 %v495, 7
        %v497 = vsub.s32 5, %v496
        %v498 = vrot.slane %v300, %v497
        %v499 = vlaneseq
        %v500 = vshrl.u32 %v499, 7
        %v501 = vsub.s32 6, %v500
        %v502 = vrot.slane %v300, %v501
        %v503 = vlaneseq
        %v504 = vshrl.u32 %v503, 7
        %v505 = vsub.s32 7, %v504
        %v506 = vrot.slane %v300, %v505
        %v507 = vlaneseq
        %v508 = vshrl.u32 %v507, 7
        %v509 = vsub.s32 0, %v508
        %v510 = vrot.slane %v303, %v509
        %v511 = vlaneseq
        %v512 = vshrl.u32 %v511, 7
        %v513 = vsub.s32 1, %v512
        %v514 = vrot.slane %v303, %v513
        %v515 = vlaneseq
        %v516 = vshrl.u32 %v515, 7
        %v517 = vsub.s32 2, %v516
        %v518 = vrot.slane %v303, %v517
        %v519 = vlaneseq
        %v520 = vshrl.u32 %v519, 7
        %v521 = vsub.s32 3, %v520
        %v522 = vrot.slane %v303, %v521
        %v523 = vlaneseq
        %v524 = vshrl.u32 %v523, 7
        %v525 = vsub.s32 4, %v524
        %v526 = vrot.slane %v303, %v525
        %v527 = vlaneseq
        %v528 = vshrl.u32 %v527, 7
        %v529 = vsub.s32 5, %v528
        %v530 = vrot.slane %v303, %v529
        %v531 = vlaneseq
        %v532 = vshrl.u32 %v531, 7
        %v533 = vsub.s32 6, %v532
        %v534 = vrot.slane %v303, %v533
        %v535 = vlaneseq
        %v536 = vshrl.u32 %v535, 7
        %v537 = vsub.s32 7, %v536
        %v538 = vrot.slane %v303, %v537
        %v539 = vlaneseq
        %v540 = vshrl.u32 %v539, 7
        %v541 = vsub.s32 0, %v540
        %v542 = vrot.slane %v306, %v541
        %v543 = vlaneseq
        %v544 = vshrl.u32 %v543, 7
        %v545 = vsub.s32 1, %v544
        %v546 = vrot.slane %v306, %v545
        %v547 = vlaneseq
        %v548 = vshrl.u32 %v547, 7
        %v549 = vsub.s32 2, %v548
        %v550 = vrot.slane %v306, %v549
        %v551 = vlaneseq
        %v552 = vshrl.u32 %v551, 7
        %v553 = vsub.s32 3, %v552
        %v554 = vrot.slane %v306, %v553
        %v555 = vlaneseq
        %v556 = vshrl.u32 %v555, 7
        %v557 = vsub.s32 4, %v556
        %v558 = vrot.slane %v306, %v557
        %v559 = vlaneseq
        %v560 = vshrl.u32 %v559, 7
        %v561 = vsub.s32 5, %v560
        %v562 = vrot.slane %v306, %v561
        %v563 = vlaneseq
        %v564 = vshrl.u32 %v563, 7
        %v565 = vsub.s32 6, %v564
        %v566 = vrot.slane %v306, %v565
        %v567 = vlaneseq
        %v568 = vshrl.u32 %v567, 7
        %v569 = vsub.s32 7, %v568
        %v570 = vrot.slane %v306, %v569
        %v571 = vcombine.low %v318, %v322
        %v572 = vcombine.low %v326, %v330
        %v573 = vcombine.low %v334, %v338
        %v574 = vcombine.low %v342, %v346
        %v576 = vunpack.c.l.s4 1966171168
        %v577 = vunpack.c.0.s8 %v576
        %v578 = vlaneseq
        %v579 = vshrl.u32 %v578, 7
        %v580 = vsub.s32 %v577, %v579
        %v581 = vrot.slane %v571, %v580
        %v583 = vunpack.c.l.s4 1966171168
        %v584 = vunpack.c.0.s8 %v583
        %v585 = vlaneseq
        %v586 = vshrl.u32 %v585, 7
        %v587 = vsub.s32 %v584, %v586
        %v588 = vrot.slane %v572, %v587
        %v590 = vunpack.c.l.s4 1966171168
        %v591 = vunpack.c.0.s8 %v590
        %v592 = vlaneseq
        %v593 = vshrl.u32 %v592, 7
        %v594 = vsub.s32 %v591, %v593
        %v595 = vrot.slane %v573, %v594
        %v597 = vunpack.c.l.s4 1966171168
        %v598 = vunpack.c.0.s8 %v597
        %v599 = vlaneseq
        %v600 = vshrl.u32 %v599, 7
        %v601 = vsub.s32 %v598, %v600
        %v602 = vrot.slane %v574, %v601
        %v603 = vcombine.low %v581, %v588
        %v604 = vcombine.low %v595, %v602
        %v606 = vunpack.c.l.s4 1966171168
        %v607 = vunpack.c.0.s8 %v606
        %v608 = vlaneseq
        %v609 = vshrl.u32 %v608, 7
        %v610 = vsub.s32 %v607, %v609
        %v611 = vrot.slane %v603, %v610
        %v613 = vunpack.c.l.s4 1966171168
        %v614 = vunpack.c.0.s8 %v613
        %v615 = vlaneseq
        %v616 = vshrl.u32 %v615, 7
        %v617 = vsub.s32 %v614, %v616
        %v618 = vrot.slane %v604, %v617
        %v619 = vcombine.low %v611, %v618
        %v620 = vcombine.low %v350, %v354
        %v621 = vcombine.low %v358, %v362
        %v622 = vcombine.low %v366, %v370
        %v623 = vcombine.low %v374, %v378
        %v625 = vunpack.c.l.s4 1966171168
        %v626 = vunpack.c.0.s8 %v625
        %v627 = vlaneseq
        %v628 = vshrl.u32 %v627, 7
        %v629 = vsub.s32 %v626, %v628
        %v630 = vrot.slane %v620, %v629
        %v632 = vunpack.c.l.s4 1966171168
        %v633 = vunpack.c.0.s8 %v632
        %v634 = vlaneseq
        %v635 = vshrl.u32 %v634, 7
        %v636 = vsub.s32 %v633, %v635
        %v637 = vrot.slane %v621, %v636
        %v639 = vunpack.c.l.s4 1966171168
        %v640 = vunpack.c.0.s8 %v639
        %v641 = vlaneseq
        %v642 = vshrl.u32 %v641, 7
        %v643 = vsub.s32 %v640, %v642
        %v644 = vrot.slane %v622, %v643
        %v646 = vunpack.c.l.s4 1966171168
        %v647 = vunpack.c.0.s8 %v646
        %v648 = vlaneseq
        %v649 = vshrl.u32 %v648, 7
        %v650 = vsub.s32 %v647, %v649
        %v651 = vrot.slane %v623, %v650
        %v652 = vcombine.low %v630, %v637
        %v653 = vcombine.low %v644, %v651
        %v655 = vunpack.c.l.s4 1966171168
        %v656 = vunpack.c.0.s8 %v655
        %v657 = vlaneseq
        %v658 = vshrl.u32 %v657, 7
        %v659 = vsub.s32 %v656, %v658
        %v660 = vrot.slane %v652, %v659
        %v662 = vunpack.c.l.s4 1966171168
        %v663 = vunpack.c.0.s8 %v662
        %v664 = vlaneseq
        %v665 = vshrl.u32 %v664, 7
        %v666 = vsub.s32 %v663, %v665
        %v667 = vrot.slane %v653, %v666
        %v668 = vcombine.low %v660, %v667
        %v669 = vcombine.low %v382, %v386
        %v670 = vcombine.low %v390, %v394
        %v671 = vcombine.low %v398, %v402
        %v672 = vcombine.low %v406, %v410
        %v674 = vunpack.c.l.s4 1966171168
        %v675 = vunpack.c.0.s8 %v674
        %v676 = vlaneseq
        %v677 = vshrl.u32 %v676, 7
        %v678 = vsub.s32 %v675, %v677
        %v679 = vrot.slane %v669, %v678
        %v681 = vunpack.c.l.s4 1966171168
        %v682 = vunpack.c.0.s8 %v681
        %v683 = vlaneseq
        %v684 = vshrl.u32 %v683, 7
        %v685 = vsub.s32 %v682, %v684
        %v686 = vrot.slane %v670, %v685
        %v688 = vunpack.c.l.s4 1966171168
        %v689 = vunpack.c.0.s8 %v688
        %v690 = vlaneseq
        %v691 = vshrl.u32 %v690, 7
        %v692 = vsub.s32 %v689, %v691
        %v693 = vrot.slane %v671, %v692
        %v695 = vunpack.c.l.s4 1966171168
        %v696 = vunpack.c.0.s8 %v695
        %v697 = vlaneseq
        %v698 = vshrl.u32 %v697, 7
        %v699 = vsub.s32 %v696, %v698
        %v700 = vrot.slane %v672, %v699
        %v701 = vcombine.low %v679, %v686
        %v702 = vcombine.low %v693, %v700
        %v704 = vunpack.c.l.s4 1966171168
        %v705 = vunpack.c.0.s8 %v704
        %v706 = vlaneseq
        %v707 = vshrl.u32 %v706, 7
        %v708 = vsub.s32 %v705, %v707
        %v709 = vrot.slane %v701, %v708
        %v711 = vunpack.c.l.s4 1966171168
        %v712 = vunpack.c.0.s8 %v711
        %v713 = vlaneseq
        %v714 = vshrl.u32 %v713, 7
        %v715 = vsub.s32 %v712, %v714
        %v716 = vrot.slane %v702, %v715
        %v717 = vcombine.low %v709, %v716
        %v718 = vcombine.low %v414, %v418
        %v719 = vcombine.low %v422, %v426
        %v720 = vcombine.low %v430, %v434
        %v721 = vcombine.low %v438, %v442
        %v723 = vunpack.c.l.s4 1966171168
        %v724 = vunpack.c.0.s8 %v723
        %v725 = vlaneseq
        %v726 = vshrl.u32 %v725, 7
        %v727 = vsub.s32 %v724, %v726
        %v728 = vrot.slane %v718, %v727
        %v730 = vunpack.c.l.s4 1966171168
        %v731 = vunpack.c.0.s8 %v730
        %v732 = vlaneseq
        %v733 = vshrl.u32 %v732, 7
        %v734 = vsub.s32 %v731, %v733
        %v735 = vrot.slane %v719, %v734
        %v737 = vunpack.c.l.s4 1966171168
        %v738 = vunpack.c.0.s8 %v737
        %v739 = vlaneseq
        %v740 = vshrl.u32 %v739, 7
        %v741 = vsub.s32 %v738, %v740
        %v742 = vrot.slane %v720, %v741
        %v744 = vunpack.c.l.s4 1966171168
        %v745 = vunpack.c.0.s8 %v744
        %v746 = vlaneseq
        %v747 = vshrl.u32 %v746, 7
        %v748 = vsub.s32 %v745, %v747
        %v749 = vrot.slane %v721, %v748
        %v750 = vcombine.low %v728, %v735
        %v751 = vcombine.low %v742, %v749
        %v753 = vunpack.c.l.s4 1966171168
        %v754 = vunpack.c.0.s8 %v753
        %v755 = vlaneseq
        %v756 = vshrl.u32 %v755, 7
        %v757 = vsub.s32 %v754, %v756
        %v758 = vrot.slane %v750, %v757
        %v760 = vunpack.c.l.s4 1966171168
        %v761 = vunpack.c.0.s8 %v760
        %v762 = vlaneseq
        %v763 = vshrl.u32 %v762, 7
        %v764 = vsub.s32 %v761, %v763
        %v765 = vrot.slane %v751, %v764
        %v766 = vcombine.low %v758, %v765
        %v767 = vcombine.low %v446, %v450
        %v768 = vcombine.low %v454, %v458
        %v769 = vcombine.low %v462, %v466
        %v770 = vcombine.low %v470, %v474
        %v772 = vunpack.c.l.s4 1966171168
        %v773 = vunpack.c.0.s8 %v772
        %v774 = vlaneseq
        %v775 = vshrl.u32 %v774, 7
        %v776 = vsub.s32 %v773, %v775
        %v777 = vrot.slane %v767, %v776
        %v779 = vunpack.c.l.s4 1966171168
        %v780 = vunpack.c.0.s8 %v779
        %v781 = vlaneseq
        %v782 = vshrl.u32 %v781, 7
        %v783 = vsub.s32 %v780, %v782
        %v784 = vrot.slane %v768, %v783
        %v786 = vunpack.c.l.s4 1966171168
        %v787 = vunpack.c.0.s8 %v786
        %v788 = vlaneseq
        %v789 = vshrl.u32 %v788, 7
        %v790 = vsub.s32 %v787, %v789
        %v791 = vrot.slane %v769, %v790
        %v793 = vunpack.c.l.s4 1966171168
        %v794 = vunpack.c.0.s8 %v793
        %v795 = vlaneseq
        %v796 = vshrl.u32 %v795, 7
        %v797 = vsub.s32 %v794, %v796
        %v798 = vrot.slane %v770, %v797
        %v799 = vcombine.low %v777, %v784
        %v800 = vcombine.low %v791, %v798
        %v802 = vunpack.c.l.s4 1966171168
        %v803 = vunpack.c.0.s8 %v802
        %v804 = vlaneseq
        %v805 = vshrl.u32 %v804, 7
        %v806 = vsub.s32 %v803, %v805
        %v807 = vrot.slane %v799, %v806
        %v809 = vunpack.c.l.s4 1966171168
        %v810 = vunpack.c.0.s8 %v809
        %v811 = vlaneseq
        %v812 = vshrl.u32 %v811, 7
        %v813 = vsub.s32 %v810, %v812
        %v814 = vrot.slane %v800, %v813
        %v815 = vcombine.low %v807, %v814
        %v816 = vcombine.low %v478, %v482
        %v817 = vcombine.low %v486, %v490
        %v818 = vcombine.low %v494, %v498
        %v819 = vcombine.low %v502, %v506
        %v821 = vunpack.c.l.s4 1966171168
        %v822 = vunpack.c.0.s8 %v821
        %v823 = vlaneseq
        %v824 = vshrl.u32 %v823, 7
        %v825 = vsub.s32 %v822, %v824
        %v826 = vrot.slane %v816, %v825
        %v828 = vunpack.c.l.s4 1966171168
        %v829 = vunpack.c.0.s8 %v828
        %v830 = vlaneseq
        %v831 = vshrl.u32 %v830, 7
        %v832 = vsub.s32 %v829, %v831
        %v833 = vrot.slane %v817, %v832
        %v835 = vunpack.c.l.s4 1966171168
        %v836 = vunpack.c.0.s8 %v835
        %v837 = vlaneseq
        %v838 = vshrl.u32 %v837, 7
        %v839 = vsub.s32 %v836, %v838
        %v840 = vrot.slane %v818, %v839
        %v842 = vunpack.c.l.s4 1966171168
        %v843 = vunpack.c.0.s8 %v842
        %v844 = vlaneseq
        %v845 = vshrl.u32 %v844, 7
        %v846 = vsub.s32 %v843, %v845
        %v847 = vrot.slane %v819, %v846
        %v848 = vcombine.low %v826, %v833
        %v849 = vcombine.low %v840, %v847
        %v851 = vunpack.c.l.s4 1966171168
        %v852 = vunpack.c.0.s8 %v851
        %v853 = vlaneseq
        %v854 = vshrl.u32 %v853, 7
        %v855 = vsub.s32 %v852, %v854
        %v856 = vrot.slane %v848, %v855
        %v858 = vunpack.c.l.s4 1966171168
        %v859 = vunpack.c.0.s8 %v858
        %v860 = vlaneseq
        %v861 = vshrl.u32 %v860, 7
        %v862 = vsub.s32 %v859, %v861
        %v863 = vrot.slane %v849, %v862
        %v864 = vcombine.low %v856, %v863
        %v865 = vcombine.low %v510, %v514
        %v866 = vcombine.low %v518, %v522
        %v867 = vcombine.low %v526, %v530
        %v868 = vcombine.low %v534, %v538
        %v870 = vunpack.c.l.s4 1966171168
        %v871 = vunpack.c.0.s8 %v870
        %v872 = vlaneseq
        %v873 = vshrl.u32 %v872, 7
        %v874 = vsub.s32 %v871, %v873
        %v875 = vrot.slane %v865, %v874
        %v877 = vunpack.c.l.s4 1966171168
        %v878 = vunpack.c.0.s8 %v877
        %v879 = vlaneseq
        %v880 = vshrl.u32 %v879, 7
        %v881 = vsub.s32 %v878, %v880
        %v882 = vrot.slane %v866, %v881
        %v884 = vunpack.c.l.s4 1966171168
        %v885 = vunpack.c.0.s8 %v884
        %v886 = vlaneseq
        %v887 = vshrl.u32 %v886, 7
        %v888 = vsub.s32 %v885, %v887
        %v889 = vrot.slane %v867, %v888
        %v891 = vunpack.c.l.s4 1966171168
        %v892 = vunpack.c.0.s8 %v891
        %v893 = vlaneseq
        %v894 = vshrl.u32 %v893, 7
        %v895 = vsub.s32 %v892, %v894
        %v896 = vrot.slane %v868, %v895
        %v897 = vcombine.low %v875, %v882
        %v898 = vcombine.low %v889, %v896
        %v900 = vunpack.c.l.s4 1966171168
        %v901 = vunpack.c.0.s8 %v900
        %v902 = vlaneseq
        %v903 = vshrl.u32 %v902, 7
        %v904 = vsub.s32 %v901, %v903
        %v905 = vrot.slane %v897, %v904
        %v907 = vunpack.c.l.s4 1966171168
        %v908 = vunpack.c.0.s8 %v907
        %v909 = vlaneseq
        %v910 = vshrl.u32 %v909, 7
        %v911 = vsub.s32 %v908, %v910
        %v912 = vrot.slane %v898, %v911
        %v913 = vcombine.low %v905, %v912
        %v914 = vcombine.low %v542, %v546
        %v915 = vcombine.low %v550, %v554
        %v916 = vcombine.low %v558, %v562
        %v917 = vcombine.low %v566, %v570
        %v919 = vunpack.c.l.s4 1966171168
        %v920 = vunpack.c.0.s8 %v919
        %v921 = vlaneseq
        %v922 = vshrl.u32 %v921, 7
        %v923 = vsub.s32 %v920, %v922
        %v924 = vrot.slane %v914, %v923
        %v926 = vunpack.c.l.s4 1966171168
        %v927 = vunpack.c.0.s8 %v926
        %v928 = vlaneseq
        %v929 = vshrl.u32 %v928, 7
        %v930 = vsub.s32 %v927, %v929
        %v931 = vrot.slane %v915, %v930
        %v933 = vunpack.c.l.s4 1966171168
        %v934 = vunpack.c.0.s8 %v933
        %v935 = vlaneseq
        %v936 = vshrl.u32 %v935, 7
        %v937 = vsub.s32 %v934, %v936
        %v938 = vrot.slane %v916, %v937
        %v940 = vunpack.c.l.s4 1966171168
        %v941 = vunpack.c.0.s8 %v940
        %v942 = vlaneseq
        %v943 = vshrl.u32 %v942, 7
        %v944 = vsub.s32 %v941, %v943
        %v945 = vrot.slane %v917, %v944
        %v946 = vcombine.low %v924, %v931
        %v947 = vcombine.low %v938, %v945
        %v949 = vunpack.c.l.s4 1966171168
        %v950 = vunpack.c.0.s8 %v949
        %v951 = vlaneseq
        %v952 = vshrl.u32 %v951, 7
        %v953 = vsub.s32 %v950, %v952
        %v954 = vrot.slane %v946, %v953
        %v956 = vunpack.c.l.s4 1966171168
        %v957 = vunpack.c.0.s8 %v956
        %v958 = vlaneseq
        %v959 = vshrl.u32 %v958, 7
        %v960 = vsub.s32 %v957, %v959
        %v961 = vrot.slane %v947, %v960
        %v962 = vcombine.low %v954, %v961
        %963 = vset.pattern.permute.xlu0 0
        %964 = vperm.xlu0 %963, %v619
        %v965 = vpop.permute.xlu0 %964
        %966 = vset.pattern.permute.xlu0 0
        %967 = vperm.xlu0 %966, %v668
        %v968 = vpop.permute.xlu0 %967
        %969 = vset.pattern.permute.xlu0 0
        %970 = vperm.xlu0 %969, %v717
        %v971 = vpop.permute.xlu0 %970
        %972 = vset.pattern.permute.xlu0 0
        %973 = vperm.xlu0 %972, %v766
        %v974 = vpop.permute.xlu0 %973
        %975 = vset.pattern.permute.xlu0 0
        %976 = vperm.xlu0 %975, %v815
        %v977 = vpop.permute.xlu0 %976
        %978 = vset.pattern.permute.xlu0 0
        %979 = vperm.xlu0 %978, %v864
        %v980 = vpop.permute.xlu0 %979
        %981 = vset.pattern.permute.xlu0 0
        %982 = vperm.xlu0 %981, %v913
        %v983 = vpop.permute.xlu0 %982
        %984 = vset.pattern.permute.xlu0 0
        %985 = vperm.xlu0 %984, %v962
        %v986 = vpop.permute.xlu0 %985
        %v987 = vlaneseq
        %v988 = vand.u32 %v987, 127
        %v989 = vlaneseq
        %v990 = vshrl.u32 %v989, 7
        %v991 = vsub.s32 %v988, %v990
        %v992 = vrot.slane %v965, %v991
        %v993 = vadd.s32 %v988, 4294967288
        %v994 = vlaneseq
        %v995 = vshrl.u32 %v994, 7
        %v996 = vsub.s32 %v993, %v995
        %v997 = vrot.slane %v968, %v996
        %vm998 = vcmask 130112
        %v999 = vsel %vm998, %v997, %v992
        %v1000 = vadd.s32 %v988, 4294967280
        %v1001 = vlaneseq
        %v1002 = vshrl.u32 %v1001, 7
        %v1003 = vsub.s32 %v1000, %v1002
        %v1004 = vrot.slane %v971, %v1003
        %vm1005 = vcmask 195712
        %v1006 = vsel %vm1005, %v1004, %v999
        %v1007 = vadd.s32 %v988, 4294967272
        %v1008 = vlaneseq
        %v1009 = vshrl.u32 %v1008, 7
        %v1010 = vsub.s32 %v1007, %v1009
        %v1011 = vrot.slane %v974, %v1010
        %vm1012 = vcmask 261312
        %v1013 = vsel %vm1012, %v1011, %v1006
        %v1014 = vadd.s32 %v988, 4294967264
        %v1015 = vlaneseq
        %v1016 = vshrl.u32 %v1015, 7
        %v1017 = vsub.s32 %v1014, %v1016
        %v1018 = vrot.slane %v977, %v1017
        %vm1019 = vcmask 326912
        %v1020 = vsel %vm1019, %v1018, %v1013
        %v1021 = vadd.s32 %v988, 4294967256
        %v1022 = vlaneseq
        %v1023 = vshrl.u32 %v1022, 7
        %v1024 = vsub.s32 %v1021, %v1023
        %v1025 = vrot.slane %v980, %v1024
        %vm1026 = vcmask 392512
        %v1027 = vsel %vm1026, %v1025, %v1020
        %v1028 = vadd.s32 %v988, 4294967248
        %v1029 = vlaneseq
        %v1030 = vshrl.u32 %v1029, 7
        %v1031 = vsub.s32 %v1028, %v1030
        %v1032 = vrot.slane %v983, %v1031
        %vm1033 = vcmask 458112
        %v1034 = vsel %vm1033, %v1032, %v1027
        %v1035 = vadd.s32 %v988, 4294967240
        %v1036 = vlaneseq
        %v1037 = vshrl.u32 %v1036, 7
        %v1038 = vsub.s32 %v1035, %v1037
        %v1039 = vrot.slane %v986, %v1038
        %vm1040 = vcmask 523712
        %v1041 = vsel %vm1040, %v1039, %v1034
        %v1043 = vunpack.c.l.s4 1966171168
        %v1044 = vunpack.c.0.s8 %v1043
        %v1045 = vlaneseq
        %v1046 = vshrl.u32 %v1045, 7
        %v1047 = vsub.s32 %v1044, %v1046
        %v1048 = vrot.slane %v1041, %v1047
        %v1050 = vunpack.c.l.s4 1966171168
        %v1051 = vunpack.c.0.s8 %v1050
        %v1052 = vlaneseq
        %v1053 = vshrl.u32 %v1052, 7
        %v1054 = vsub.s32 %v1051, %v1053
        %v1055 = vrot.slane %v1048, %v1054
        %v1057 = vadd.f32 %v282, %v1055
        %vm1058 = vcmask 516096
        %1059 = vst.msk [vmem:[#allocation2] sm:$0x1] %vm1058, %v1057
        %v1060 = vld [vmem:[#allocation3] sm:$0x1]
        %v1061 = vmul.f32 %v266, %v266
        %v1062 = vmul.f32 %v267, %v267
        %v1063 = vmul.f32 %v268, %v268
        %v1064 = vmul.f32 %v269, %v269
        %v1065 = vmul.f32 %v270, %v270
        %v1066 = vmul.f32 %v271, %v271
        %v1067 = vmul.f32 %v272, %v272
        %v1068 = vmul.f32 %v273, %v273
        %v1069 = vmul.f32 %v274, %v274
        %v1070 = vmul.f32 %v275, %v275
        %v1071 = vmul.f32 %v276, %v276
        %v1072 = vmul.f32 %v277, %v277
        %v1073 = vmul.f32 %v278, %v278
        %v1074 = vmul.f32 %v279, %v279
        %v1075 = vmul.f32 %v280, %v280
        %v1076 = vmul.f32 %v281, %v281
        %v1077 = vadd.f32 %v1061, %v1062
        %1078 = vadd.xlane.f32.xlu0 %v1077
        %v1079 = vpop.xlane.xlu0 %1078
        %v1080 = vadd.f32 %v1063, %v1064
        %1081 = vadd.xlane.f32.xlu0 %v1080
        %v1082 = vpop.xlane.xlu0 %1081
        %v1083 = vadd.f32 %v1065, %v1066
        %1084 = vadd.xlane.f32.xlu0 %v1083
        %v1085 = vpop.xlane.xlu0 %1084
        %v1086 = vadd.f32 %v1067, %v1068
        %1087 = vadd.xlane.f32.xlu0 %v1086
        %v1088 = vpop.xlane.xlu0 %1087
        %v1089 = vadd.f32 %v1069, %v1070
        %1090 = vadd.xlane.f32.xlu0 %v1089
        %v1091 = vpop.xlane.xlu0 %1090
        %v1092 = vadd.f32 %v1071, %v1072
        %1093 = vadd.xlane.f32.xlu0 %v1092
        %v1094 = vpop.xlane.xlu0 %1093
        %v1095 = vadd.f32 %v1073, %v1074
        %1096 = vadd.xlane.f32.xlu0 %v1095
        %v1097 = vpop.xlane.xlu0 %1096
        %v1098 = vadd.f32 %v1075, %v1076
        %1099 = vadd.xlane.f32.xlu0 %v1098
        %v1100 = vpop.xlane.xlu0 %1099
        %v1109 = vlaneseq
        %v1110 = vshrl.u32 %v1109, 7
        %v1111 = vsub.s32 0, %v1110
        %v1112 = vrot.slane %v1079, %v1111
        %v1113 = vlaneseq
        %v1114 = vshrl.u32 %v1113, 7
        %v1115 = vsub.s32 1, %v1114
        %v1116 = vrot.slane %v1079, %v1115
        %v1117 = vlaneseq
        %v1118 = vshrl.u32 %v1117, 7
        %v1119 = vsub.s32 2, %v1118
        %v1120 = vrot.slane %v1079, %v1119
        %v1121 = vlaneseq
        %v1122 = vshrl.u32 %v1121, 7
        %v1123 = vsub.s32 3, %v1122
        %v1124 = vrot.slane %v1079, %v1123
        %v1125 = vlaneseq
        %v1126 = vshrl.u32 %v1125, 7
        %v1127 = vsub.s32 4, %v1126
        %v1128 = vrot.slane %v1079, %v1127
        %v1129 = vlaneseq
        %v1130 = vshrl.u32 %v1129, 7
        %v1131 = vsub.s32 5, %v1130
        %v1132 = vrot.slane %v1079, %v1131
        %v1133 = vlaneseq
        %v1134 = vshrl.u32 %v1133, 7
        %v1135 = vsub.s32 6, %v1134
        %v1136 = vrot.slane %v1079, %v1135
        %v1137 = vlaneseq
        %v1138 = vshrl.u32 %v1137, 7
        %v1139 = vsub.s32 7, %v1138
        %v1140 = vrot.slane %v1079, %v1139
        %v1141 = vlaneseq
        %v1142 = vshrl.u32 %v1141, 7
        %v1143 = vsub.s32 0, %v1142
        %v1144 = vrot.slane %v1082, %v1143
        %v1145 = vlaneseq
        %v1146 = vshrl.u32 %v1145, 7
        %v1147 = vsub.s32 1, %v1146
        %v1148 = vrot.slane %v1082, %v1147
        %v1149 = vlaneseq
        %v1150 = vshrl.u32 %v1149, 7
        %v1151 = vsub.s32 2, %v1150
        %v1152 = vrot.slane %v1082, %v1151
        %v1153 = vlaneseq
        %v1154 = vshrl.u32 %v1153, 7
        %v1155 = vsub.s32 3, %v1154
        %v1156 = vrot.slane %v1082, %v1155
        %v1157 = vlaneseq
        %v1158 = vshrl.u32 %v1157, 7
        %v1159 = vsub.s32 4, %v1158
        %v1160 = vrot.slane %v1082, %v1159
        %v1161 = vlaneseq
        %v1162 = vshrl.u32 %v1161, 7
        %v1163 = vsub.s32 5, %v1162
        %v1164 = vrot.slane %v1082, %v1163
        %v1165 = vlaneseq
        %v1166 = vshrl.u32 %v1165, 7
        %v1167 = vsub.s32 6, %v1166
        %v1168 = vrot.slane %v1082, %v1167
        %v1169 = vlaneseq
        %v1170 = vshrl.u32 %v1169, 7
        %v1171 = vsub.s32 7, %v1170
        %v1172 = vrot.slane %v1082, %v1171
        %v1173 = vlaneseq
        %v1174 = vshrl.u32 %v1173, 7
        %v1175 = vsub.s32 0, %v1174
        %v1176 = vrot.slane %v1085, %v1175
        %v1177 = vlaneseq
        %v1178 = vshrl.u32 %v1177, 7
        %v1179 = vsub.s32 1, %v1178
        %v1180 = vrot.slane %v1085, %v1179
        %v1181 = vlaneseq
        %v1182 = vshrl.u32 %v1181, 7
        %v1183 = vsub.s32 2, %v1182
        %v1184 = vrot.slane %v1085, %v1183
        %v1185 = vlaneseq
        %v1186 = vshrl.u32 %v1185, 7
        %v1187 = vsub.s32 3, %v1186
        %v1188 = vrot.slane %v1085, %v1187
        %v1189 = vlaneseq
        %v1190 = vshrl.u32 %v1189, 7
        %v1191 = vsub.s32 4, %v1190
        %v1192 = vrot.slane %v1085, %v1191
        %v1193 = vlaneseq
        %v1194 = vshrl.u32 %v1193, 7
        %v1195 = vsub.s32 5, %v1194
        %v1196 = vrot.slane %v1085, %v1195
        %v1197 = vlaneseq
        %v1198 = vshrl.u32 %v1197, 7
        %v1199 = vsub.s32 6, %v1198
        %v1200 = vrot.slane %v1085, %v1199
        %v1201 = vlaneseq
        %v1202 = vshrl.u32 %v1201, 7
        %v1203 = vsub.s32 7, %v1202
        %v1204 = vrot.slane %v1085, %v1203
        %v1205 = vlaneseq
        %v1206 = vshrl.u32 %v1205, 7
        %v1207 = vsub.s32 0, %v1206
        %v1208 = vrot.slane %v1088, %v1207
        %v1209 = vlaneseq
        %v1210 = vshrl.u32 %v1209, 7
        %v1211 = vsub.s32 1, %v1210
        %v1212 = vrot.slane %v1088, %v1211
        %v1213 = vlaneseq
        %v1214 = vshrl.u32 %v1213, 7
        %v1215 = vsub.s32 2, %v1214
        %v1216 = vrot.slane %v1088, %v1215
        %v1217 = vlaneseq
        %v1218 = vshrl.u32 %v1217, 7
        %v1219 = vsub.s32 3, %v1218
        %v1220 = vrot.slane %v1088, %v1219
        %v1221 = vlaneseq
        %v1222 = vshrl.u32 %v1221, 7
        %v1223 = vsub.s32 4, %v1222
        %v1224 = vrot.slane %v1088, %v1223
        %v1225 = vlaneseq
        %v1226 = vshrl.u32 %v1225, 7
        %v1227 = vsub.s32 5, %v1226
        %v1228 = vrot.slane %v1088, %v1227
        %v1229 = vlaneseq
        %v1230 = vshrl.u32 %v1229, 7
        %v1231 = vsub.s32 6, %v1230
        %v1232 = vrot.slane %v1088, %v1231
        %v1233 = vlaneseq
        %v1234 = vshrl.u32 %v1233, 7
        %v1235 = vsub.s32 7, %v1234
        %v1236 = vrot.slane %v1088, %v1235
        %v1237 = vlaneseq
        %v1238 = vshrl.u32 %v1237, 7
        %v1239 = vsub.s32 0, %v1238
        %v1240 = vrot.slane %v1091, %v1239
        %v1241 = vlaneseq
        %v1242 = vshrl.u32 %v1241, 7
        %v1243 = vsub.s32 1, %v1242
        %v1244 = vrot.slane %v1091, %v1243
        %v1245 = vlaneseq
        %v1246 = vshrl.u32 %v1245, 7
        %v1247 = vsub.s32 2, %v1246
        %v1248 = vrot.slane %v1091, %v1247
        %v1249 = vlaneseq
        %v1250 = vshrl.u32 %v1249, 7
        %v1251 = vsub.s32 3, %v1250
        %v1252 = vrot.slane %v1091, %v1251
        %v1253 = vlaneseq
        %v1254 = vshrl.u32 %v1253, 7
        %v1255 = vsub.s32 4, %v1254
        %v1256 = vrot.slane %v1091, %v1255
        %v1257 = vlaneseq
        %v1258 = vshrl.u32 %v1257, 7
        %v1259 = vsub.s32 5, %v1258
        %v1260 = vrot.slane %v1091, %v1259
        %v1261 = vlaneseq
        %v1262 = vshrl.u32 %v1261, 7
        %v1263 = vsub.s32 6, %v1262
        %v1264 = vrot.slane %v1091, %v1263
        %v1265 = vlaneseq
        %v1266 = vshrl.u32 %v1265, 7
        %v1267 = vsub.s32 7, %v1266
        %v1268 = vrot.slane %v1091, %v1267
        %v1269 = vlaneseq
        %v1270 = vshrl.u32 %v1269, 7
        %v1271 = vsub.s32 0, %v1270
        %v1272 = vrot.slane %v1094, %v1271
        %v1273 = vlaneseq
        %v1274 = vshrl.u32 %v1273, 7
        %v1275 = vsub.s32 1, %v1274
        %v1276 = vrot.slane %v1094, %v1275
        %v1277 = vlaneseq
        %v1278 = vshrl.u32 %v1277, 7
        %v1279 = vsub.s32 2, %v1278
        %v1280 = vrot.slane %v1094, %v1279
        %v1281 = vlaneseq
        %v1282 = vshrl.u32 %v1281, 7
        %v1283 = vsub.s32 3, %v1282
        %v1284 = vrot.slane %v1094, %v1283
        %v1285 = vlaneseq
        %v1286 = vshrl.u32 %v1285, 7
        %v1287 = vsub.s32 4, %v1286
        %v1288 = vrot.slane %v1094, %v1287
        %v1289 = vlaneseq
        %v1290 = vshrl.u32 %v1289, 7
        %v1291 = vsub.s32 5, %v1290
        %v1292 = vrot.slane %v1094, %v1291
        %v1293 = vlaneseq
        %v1294 = vshrl.u32 %v1293, 7
        %v1295 = vsub.s32 6, %v1294
        %v1296 = vrot.slane %v1094, %v1295
        %v1297 = vlaneseq
        %v1298 = vshrl.u32 %v1297, 7
        %v1299 = vsub.s32 7, %v1298
        %v1300 = vrot.slane %v1094, %v1299
        %v1301 = vlaneseq
        %v1302 = vshrl.u32 %v1301, 7
        %v1303 = vsub.s32 0, %v1302
        %v1304 = vrot.slane %v1097, %v1303
        %v1305 = vlaneseq
        %v1306 = vshrl.u32 %v1305, 7
        %v1307 = vsub.s32 1, %v1306
        %v1308 = vrot.slane %v1097, %v1307
        %v1309 = vlaneseq
        %v1310 = vshrl.u32 %v1309, 7
        %v1311 = vsub.s32 2, %v1310
        %v1312 = vrot.slane %v1097, %v1311
        %v1313 = vlaneseq
        %v1314 = vshrl.u32 %v1313, 7
        %v1315 = vsub.s32 3, %v1314
        %v1316 = vrot.slane %v1097, %v1315
        %v1317 = vlaneseq
        %v1318 = vshrl.u32 %v1317, 7
        %v1319 = vsub.s32 4, %v1318
        %v1320 = vrot.slane %v1097, %v1319
        %v1321 = vlaneseq
        %v1322 = vshrl.u32 %v1321, 7
        %v1323 = vsub.s32 5, %v1322
        %v1324 = vrot.slane %v1097, %v1323
        %v1325 = vlaneseq
        %v1326 = vshrl.u32 %v1325, 7
        %v1327 = vsub.s32 6, %v1326
        %v1328 = vrot.slane %v1097, %v1327
        %v1329 = vlaneseq
        %v1330 = vshrl.u32 %v1329, 7
        %v1331 = vsub.s32 7, %v1330
        %v1332 = vrot.slane %v1097, %v1331
        %v1333 = vlaneseq
        %v1334 = vshrl.u32 %v1333, 7
        %v1335 = vsub.s32 0, %v1334
        %v1336 = vrot.slane %v1100, %v1335
        %v1337 = vlaneseq
        %v1338 = vshrl.u32 %v1337, 7
        %v1339 = vsub.s32 1, %v1338
        %v1340 = vrot.slane %v1100, %v1339
        %v1341 = vlaneseq
        %v1342 = vshrl.u32 %v1341, 7
        %v1343 = vsub.s32 2, %v1342
        %v1344 = vrot.slane %v1100, %v1343
        %v1345 = vlaneseq
        %v1346 = vshrl.u32 %v1345, 7
        %v1347 = vsub.s32 3, %v1346
        %v1348 = vrot.slane %v1100, %v1347
        %v1349 = vlaneseq
        %v1350 = vshrl.u32 %v1349, 7
        %v1351 = vsub.s32 4, %v1350
        %v1352 = vrot.slane %v1100, %v1351
        %v1353 = vlaneseq
        %v1354 = vshrl.u32 %v1353, 7
        %v1355 = vsub.s32 5, %v1354
        %v1356 = vrot.slane %v1100, %v1355
        %v1357 = vlaneseq
        %v1358 = vshrl.u32 %v1357, 7
        %v1359 = vsub.s32 6, %v1358
        %v1360 = vrot.slane %v1100, %v1359
        %v1361 = vlaneseq
        %v1362 = vshrl.u32 %v1361, 7
        %v1363 = vsub.s32 7, %v1362
        %v1364 = vrot.slane %v1100, %v1363
        %v1365 = vcombine.low %v1112, %v1116
        %v1366 = vcombine.low %v1120, %v1124
        %v1367 = vcombine.low %v1128, %v1132
        %v1368 = vcombine.low %v1136, %v1140
        %v1370 = vunpack.c.l.s4 1966171168
        %v1371 = vunpack.c.0.s8 %v1370
        %v1372 = vlaneseq
        %v1373 = vshrl.u32 %v1372, 7
        %v1374 = vsub.s32 %v1371, %v1373
        %v1375 = vrot.slane %v1365, %v1374
        %v1377 = vunpack.c.l.s4 1966171168
        %v1378 = vunpack.c.0.s8 %v1377
        %v1379 = vlaneseq
        %v1380 = vshrl.u32 %v1379, 7
        %v1381 = vsub.s32 %v1378, %v1380
        %v1382 = vrot.slane %v1366, %v1381
        %v1384 = vunpack.c.l.s4 1966171168
        %v1385 = vunpack.c.0.s8 %v1384
        %v1386 = vlaneseq
        %v1387 = vshrl.u32 %v1386, 7
        %v1388 = vsub.s32 %v1385, %v1387
        %v1389 = vrot.slane %v1367, %v1388
        %v1391 = vunpack.c.l.s4 1966171168
        %v1392 = vunpack.c.0.s8 %v1391
        %v1393 = vlaneseq
        %v1394 = vshrl.u32 %v1393, 7
        %v1395 = vsub.s32 %v1392, %v1394
        %v1396 = vrot.slane %v1368, %v1395
        %v1397 = vcombine.low %v1375, %v1382
        %v1398 = vcombine.low %v1389, %v1396
        %v1400 = vunpack.c.l.s4 1966171168
        %v1401 = vunpack.c.0.s8 %v1400
        %v1402 = vlaneseq
        %v1403 = vshrl.u32 %v1402, 7
        %v1404 = vsub.s32 %v1401, %v1403
        %v1405 = vrot.slane %v1397, %v1404
        %v1407 = vunpack.c.l.s4 1966171168
        %v1408 = vunpack.c.0.s8 %v1407
        %v1409 = vlaneseq
        %v1410 = vshrl.u32 %v1409, 7
        %v1411 = vsub.s32 %v1408, %v1410
        %v1412 = vrot.slane %v1398, %v1411
        %v1413 = vcombine.low %v1405, %v1412
        %v1414 = vcombine.low %v1144, %v1148
        %v1415 = vcombine.low %v1152, %v1156
        %v1416 = vcombine.low %v1160, %v1164
        %v1417 = vcombine.low %v1168, %v1172
        %v1419 = vunpack.c.l.s4 1966171168
        %v1420 = vunpack.c.0.s8 %v1419
        %v1421 = vlaneseq
        %v1422 = vshrl.u32 %v1421, 7
        %v1423 = vsub.s32 %v1420, %v1422
        %v1424 = vrot.slane %v1414, %v1423
        %v1426 = vunpack.c.l.s4 1966171168
        %v1427 = vunpack.c.0.s8 %v1426
        %v1428 = vlaneseq
        %v1429 = vshrl.u32 %v1428, 7
        %v1430 = vsub.s32 %v1427, %v1429
        %v1431 = vrot.slane %v1415, %v1430
        %v1433 = vunpack.c.l.s4 1966171168
        %v1434 = vunpack.c.0.s8 %v1433
        %v1435 = vlaneseq
        %v1436 = vshrl.u32 %v1435, 7
        %v1437 = vsub.s32 %v1434, %v1436
        %v1438 = vrot.slane %v1416, %v1437
        %v1440 = vunpack.c.l.s4 1966171168
        %v1441 = vunpack.c.0.s8 %v1440
        %v1442 = vlaneseq
        %v1443 = vshrl.u32 %v1442, 7
        %v1444 = vsub.s32 %v1441, %v1443
        %v1445 = vrot.slane %v1417, %v1444
        %v1446 = vcombine.low %v1424, %v1431
        %v1447 = vcombine.low %v1438, %v1445
        %v1449 = vunpack.c.l.s4 1966171168
        %v1450 = vunpack.c.0.s8 %v1449
        %v1451 = vlaneseq
        %v1452 = vshrl.u32 %v1451, 7
        %v1453 = vsub.s32 %v1450, %v1452
        %v1454 = vrot.slane %v1446, %v1453
        %v1456 = vunpack.c.l.s4 1966171168
        %v1457 = vunpack.c.0.s8 %v1456
        %v1458 = vlaneseq
        %v1459 = vshrl.u32 %v1458, 7
        %v1460 = vsub.s32 %v1457, %v1459
        %v1461 = vrot.slane %v1447, %v1460
        %v1462 = vcombine.low %v1454, %v1461
        %v1463 = vcombine.low %v1176, %v1180
        %v1464 = vcombine.low %v1184, %v1188
        %v1465 = vcombine.low %v1192, %v1196
        %v1466 = vcombine.low %v1200, %v1204
        %v1468 = vunpack.c.l.s4 1966171168
        %v1469 = vunpack.c.0.s8 %v1468
        %v1470 = vlaneseq
        %v1471 = vshrl.u32 %v1470, 7
        %v1472 = vsub.s32 %v1469, %v1471
        %v1473 = vrot.slane %v1463, %v1472
        %v1475 = vunpack.c.l.s4 1966171168
        %v1476 = vunpack.c.0.s8 %v1475
        %v1477 = vlaneseq
        %v1478 = vshrl.u32 %v1477, 7
        %v1479 = vsub.s32 %v1476, %v1478
        %v1480 = vrot.slane %v1464, %v1479
        %v1482 = vunpack.c.l.s4 1966171168
        %v1483 = vunpack.c.0.s8 %v1482
        %v1484 = vlaneseq
        %v1485 = vshrl.u32 %v1484, 7
        %v1486 = vsub.s32 %v1483, %v1485
        %v1487 = vrot.slane %v1465, %v1486
        %v1489 = vunpack.c.l.s4 1966171168
        %v1490 = vunpack.c.0.s8 %v1489
        %v1491 = vlaneseq
        %v1492 = vshrl.u32 %v1491, 7
        %v1493 = vsub.s32 %v1490, %v1492
        %v1494 = vrot.slane %v1466, %v1493
        %v1495 = vcombine.low %v1473, %v1480
        %v1496 = vcombine.low %v1487, %v1494
        %v1498 = vunpack.c.l.s4 1966171168
        %v1499 = vunpack.c.0.s8 %v1498
        %v1500 = vlaneseq
        %v1501 = vshrl.u32 %v1500, 7
        %v1502 = vsub.s32 %v1499, %v1501
        %v1503 = vrot.slane %v1495, %v1502
        %v1505 = vunpack.c.l.s4 1966171168
        %v1506 = vunpack.c.0.s8 %v1505
        %v1507 = vlaneseq
        %v1508 = vshrl.u32 %v1507, 7
        %v1509 = vsub.s32 %v1506, %v1508
        %v1510 = vrot.slane %v1496, %v1509
        %v1511 = vcombine.low %v1503, %v1510
        %v1512 = vcombine.low %v1208, %v1212
        %v1513 = vcombine.low %v1216, %v1220
        %v1514 = vcombine.low %v1224, %v1228
        %v1515 = vcombine.low %v1232, %v1236
        %v1517 = vunpack.c.l.s4 1966171168
        %v1518 = vunpack.c.0.s8 %v1517
        %v1519 = vlaneseq
        %v1520 = vshrl.u32 %v1519, 7
        %v1521 = vsub.s32 %v1518, %v1520
        %v1522 = vrot.slane %v1512, %v1521
        %v1524 = vunpack.c.l.s4 1966171168
        %v1525 = vunpack.c.0.s8 %v1524
        %v1526 = vlaneseq
        %v1527 = vshrl.u32 %v1526, 7
        %v1528 = vsub.s32 %v1525, %v1527
        %v1529 = vrot.slane %v1513, %v1528
        %v1531 = vunpack.c.l.s4 1966171168
        %v1532 = vunpack.c.0.s8 %v1531
        %v1533 = vlaneseq
        %v1534 = vshrl.u32 %v1533, 7
        %v1535 = vsub.s32 %v1532, %v1534
        %v1536 = vrot.slane %v1514, %v1535
        %v1538 = vunpack.c.l.s4 1966171168
        %v1539 = vunpack.c.0.s8 %v1538
        %v1540 = vlaneseq
        %v1541 = vshrl.u32 %v1540, 7
        %v1542 = vsub.s32 %v1539, %v1541
        %v1543 = vrot.slane %v1515, %v1542
        %v1544 = vcombine.low %v1522, %v1529
        %v1545 = vcombine.low %v1536, %v1543
        %v1547 = vunpack.c.l.s4 1966171168
        %v1548 = vunpack.c.0.s8 %v1547
        %v1549 = vlaneseq
        %v1550 = vshrl.u32 %v1549, 7
        %v1551 = vsub.s32 %v1548, %v1550
        %v1552 = vrot.slane %v1544, %v1551
        %v1554 = vunpack.c.l.s4 1966171168
        %v1555 = vunpack.c.0.s8 %v1554
        %v1556 = vlaneseq
        %v1557 = vshrl.u32 %v1556, 7
        %v1558 = vsub.s32 %v1555, %v1557
        %v1559 = vrot.slane %v1545, %v1558
        %v1560 = vcombine.low %v1552, %v1559
        %v1561 = vcombine.low %v1240, %v1244
        %v1562 = vcombine.low %v1248, %v1252
        %v1563 = vcombine.low %v1256, %v1260
        %v1564 = vcombine.low %v1264, %v1268
        %v1566 = vunpack.c.l.s4 1966171168
        %v1567 = vunpack.c.0.s8 %v1566
        %v1568 = vlaneseq
        %v1569 = vshrl.u32 %v1568, 7
        %v1570 = vsub.s32 %v1567, %v1569
        %v1571 = vrot.slane %v1561, %v1570
        %v1573 = vunpack.c.l.s4 1966171168
        %v1574 = vunpack.c.0.s8 %v1573
        %v1575 = vlaneseq
        %v1576 = vshrl.u32 %v1575, 7
        %v1577 = vsub.s32 %v1574, %v1576
        %v1578 = vrot.slane %v1562, %v1577
        %v1580 = vunpack.c.l.s4 1966171168
        %v1581 = vunpack.c.0.s8 %v1580
        %v1582 = vlaneseq
        %v1583 = vshrl.u32 %v1582, 7
        %v1584 = vsub.s32 %v1581, %v1583
        %v1585 = vrot.slane %v1563, %v1584
        %v1587 = vunpack.c.l.s4 1966171168
        %v1588 = vunpack.c.0.s8 %v1587
        %v1589 = vlaneseq
        %v1590 = vshrl.u32 %v1589, 7
        %v1591 = vsub.s32 %v1588, %v1590
        %v1592 = vrot.slane %v1564, %v1591
        %v1593 = vcombine.low %v1571, %v1578
        %v1594 = vcombine.low %v1585, %v1592
        %v1596 = vunpack.c.l.s4 1966171168
        %v1597 = vunpack.c.0.s8 %v1596
        %v1598 = vlaneseq
        %v1599 = vshrl.u32 %v1598, 7
        %v1600 = vsub.s32 %v1597, %v1599
        %v1601 = vrot.slane %v1593, %v1600
        %v1603 = vunpack.c.l.s4 1966171168
        %v1604 = vunpack.c.0.s8 %v1603
        %v1605 = vlaneseq
        %v1606 = vshrl.u32 %v1605, 7
        %v1607 = vsub.s32 %v1604, %v1606
        %v1608 = vrot.slane %v1594, %v1607
        %v1609 = vcombine.low %v1601, %v1608
        %v1610 = vcombine.low %v1272, %v1276
        %v1611 = vcombine.low %v1280, %v1284
        %v1612 = vcombine.low %v1288, %v1292
        %v1613 = vcombine.low %v1296, %v1300
        %v1615 = vunpack.c.l.s4 1966171168
        %v1616 = vunpack.c.0.s8 %v1615
        %v1617 = vlaneseq
        %v1618 = vshrl.u32 %v1617, 7
        %v1619 = vsub.s32 %v1616, %v1618
        %v1620 = vrot.slane %v1610, %v1619
        %v1622 = vunpack.c.l.s4 1966171168
        %v1623 = vunpack.c.0.s8 %v1622
        %v1624 = vlaneseq
        %v1625 = vshrl.u32 %v1624, 7
        %v1626 = vsub.s32 %v1623, %v1625
        %v1627 = vrot.slane %v1611, %v1626
        %v1629 = vunpack.c.l.s4 1966171168
        %v1630 = vunpack.c.0.s8 %v1629
        %v1631 = vlaneseq
        %v1632 = vshrl.u32 %v1631, 7
        %v1633 = vsub.s32 %v1630, %v1632
        %v1634 = vrot.slane %v1612, %v1633
        %v1636 = vunpack.c.l.s4 1966171168
        %v1637 = vunpack.c.0.s8 %v1636
        %v1638 = vlaneseq
        %v1639 = vshrl.u32 %v1638, 7
        %v1640 = vsub.s32 %v1637, %v1639
        %v1641 = vrot.slane %v1613, %v1640
        %v1642 = vcombine.low %v1620, %v1627
        %v1643 = vcombine.low %v1634, %v1641
        %v1645 = vunpack.c.l.s4 1966171168
        %v1646 = vunpack.c.0.s8 %v1645
        %v1647 = vlaneseq
        %v1648 = vshrl.u32 %v1647, 7
        %v1649 = vsub.s32 %v1646, %v1648
        %v1650 = vrot.slane %v1642, %v1649
        %v1652 = vunpack.c.l.s4 1966171168
        %v1653 = vunpack.c.0.s8 %v1652
        %v1654 = vlaneseq
        %v1655 = vshrl.u32 %v1654, 7
        %v1656 = vsub.s32 %v1653, %v1655
        %v1657 = vrot.slane %v1643, %v1656
        %v1658 = vcombine.low %v1650, %v1657
        %v1659 = vcombine.low %v1304, %v1308
        %v1660 = vcombine.low %v1312, %v1316
        %v1661 = vcombine.low %v1320, %v1324
        %v1662 = vcombine.low %v1328, %v1332
        %v1664 = vunpack.c.l.s4 1966171168
        %v1665 = vunpack.c.0.s8 %v1664
        %v1666 = vlaneseq
        %v1667 = vshrl.u32 %v1666, 7
        %v1668 = vsub.s32 %v1665, %v1667
        %v1669 = vrot.slane %v1659, %v1668
        %v1671 = vunpack.c.l.s4 1966171168
        %v1672 = vunpack.c.0.s8 %v1671
        %v1673 = vlaneseq
        %v1674 = vshrl.u32 %v1673, 7
        %v1675 = vsub.s32 %v1672, %v1674
        %v1676 = vrot.slane %v1660, %v1675
        %v1678 = vunpack.c.l.s4 1966171168
        %v1679 = vunpack.c.0.s8 %v1678
        %v1680 = vlaneseq
        %v1681 = vshrl.u32 %v1680, 7
        %v1682 = vsub.s32 %v1679, %v1681
        %v1683 = vrot.slane %v1661, %v1682
        %v1685 = vunpack.c.l.s4 1966171168
        %v1686 = vunpack.c.0.s8 %v1685
        %v1687 = vlaneseq
        %v1688 = vshrl.u32 %v1687, 7
        %v1689 = vsub.s32 %v1686, %v1688
        %v1690 = vrot.slane %v1662, %v1689
        %v1691 = vcombine.low %v1669, %v1676
        %v1692 = vcombine.low %v1683, %v1690
        %v1694 = vunpack.c.l.s4 1966171168
        %v1695 = vunpack.c.0.s8 %v1694
        %v1696 = vlaneseq
        %v1697 = vshrl.u32 %v1696, 7
        %v1698 = vsub.s32 %v1695, %v1697
        %v1699 = vrot.slane %v1691, %v1698
        %v1701 = vunpack.c.l.s4 1966171168
        %v1702 = vunpack.c.0.s8 %v1701
        %v1703 = vlaneseq
        %v1704 = vshrl.u32 %v1703, 7
        %v1705 = vsub.s32 %v1702, %v1704
        %v1706 = vrot.slane %v1692, %v1705
        %v1707 = vcombine.low %v1699, %v1706
        %v1708 = vcombine.low %v1336, %v1340
        %v1709 = vcombine.low %v1344, %v1348
        %v1710 = vcombine.low %v1352, %v1356
        %v1711 = vcombine.low %v1360, %v1364
        %v1713 = vunpack.c.l.s4 1966171168
        %v1714 = vunpack.c.0.s8 %v1713
        %v1715 = vlaneseq
        %v1716 = vshrl.u32 %v1715, 7
        %v1717 = vsub.s32 %v1714, %v1716
        %v1718 = vrot.slane %v1708, %v1717
        %v1720 = vunpack.c.l.s4 1966171168
        %v1721 = vunpack.c.0.s8 %v1720
        %v1722 = vlaneseq
        %v1723 = vshrl.u32 %v1722, 7
        %v1724 = vsub.s32 %v1721, %v1723
        %v1725 = vrot.slane %v1709, %v1724
        %v1727 = vunpack.c.l.s4 1966171168
        %v1728 = vunpack.c.0.s8 %v1727
        %v1729 = vlaneseq
        %v1730 = vshrl.u32 %v1729, 7
        %v1731 = vsub.s32 %v1728, %v1730
        %v1732 = vrot.slane %v1710, %v1731
        %v1734 = vunpack.c.l.s4 1966171168
        %v1735 = vunpack.c.0.s8 %v1734
        %v1736 = vlaneseq
        %v1737 = vshrl.u32 %v1736, 7
        %v1738 = vsub.s32 %v1735, %v1737
        %v1739 = vrot.slane %v1711, %v1738
        %v1740 = vcombine.low %v1718, %v1725
        %v1741 = vcombine.low %v1732, %v1739
        %v1743 = vunpack.c.l.s4 1966171168
        %v1744 = vunpack.c.0.s8 %v1743
        %v1745 = vlaneseq
        %v1746 = vshrl.u32 %v1745, 7
        %v1747 = vsub.s32 %v1744, %v1746
        %v1748 = vrot.slane %v1740, %v1747
        %v1750 = vunpack.c.l.s4 1966171168
        %v1751 = vunpack.c.0.s8 %v1750
        %v1752 = vlaneseq
        %v1753 = vshrl.u32 %v1752, 7
        %v1754 = vsub.s32 %v1751, %v1753
        %v1755 = vrot.slane %v1741, %v1754
        %v1756 = vcombine.low %v1748, %v1755
        %1757 = vset.pattern.permute.xlu0 0
        %1758 = vperm.xlu0 %1757, %v1413
        %v1759 = vpop.permute.xlu0 %1758
        %1760 = vset.pattern.permute.xlu0 0
        %1761 = vperm.xlu0 %1760, %v1462
        %v1762 = vpop.permute.xlu0 %1761
        %1763 = vset.pattern.permute.xlu0 0
        %1764 = vperm.xlu0 %1763, %v1511
        %v1765 = vpop.permute.xlu0 %1764
        %1766 = vset.pattern.permute.xlu0 0
        %1767 = vperm.xlu0 %1766, %v1560
        %v1768 = vpop.permute.xlu0 %1767
        %1769 = vset.pattern.permute.xlu0 0
        %1770 = vperm.xlu0 %1769, %v1609
        %v1771 = vpop.permute.xlu0 %1770
        %1772 = vset.pattern.permute.xlu0 0
        %1773 = vperm.xlu0 %1772, %v1658
        %v1774 = vpop.permute.xlu0 %1773
        %1775 = vset.pattern.permute.xlu0 0
        %1776 = vperm.xlu0 %1775, %v1707
        %v1777 = vpop.permute.xlu0 %1776
        %1778 = vset.pattern.permute.xlu0 0
        %1779 = vperm.xlu0 %1778, %v1756
        %v1780 = vpop.permute.xlu0 %1779
        %v1781 = vlaneseq
        %v1782 = vshrl.u32 %v1781, 7
        %v1783 = vsub.s32 %v988, %v1782
        %v1784 = vrot.slane %v1759, %v1783
        %v1785 = vlaneseq
        %v1786 = vshrl.u32 %v1785, 7
        %v1787 = vsub.s32 %v993, %v1786
        %v1788 = vrot.slane %v1762, %v1787
        %v1789 = vsel %vm998, %v1788, %v1784
        %v1790 = vlaneseq
        %v1791 = vshrl.u32 %v1790, 7
        %v1792 = vsub.s32 %v1000, %v1791
        %v1793 = vrot.slane %v1765, %v1792
        %v1794 = vsel %vm1005, %v1793, %v1789
        %v1795 = vlaneseq
        %v1796 = vshrl.u32 %v1795, 7
        %v1797 = vsub.s32 %v1007, %v1796
        %v1798 = vrot.slane %v1768, %v1797
        %v1799 = vsel %vm1012, %v1798, %v1794
        %v1800 = vlaneseq
        %v1801 = vshrl.u32 %v1800, 7
        %v1802 = vsub.s32 %v1014, %v1801
        %v1803 = vrot.slane %v1771, %v1802
        %v1804 = vsel %vm1019, %v1803, %v1799
        %v1805 = vlaneseq
        %v1806 = vshrl.u32 %v1805, 7
        %v1807 = vsub.s32 %v1021, %v1806
        %v1808 = vrot.slane %v1774, %v1807
        %v1809 = vsel %vm1026, %v1808, %v1804
        %v1810 = vlaneseq
        %v1811 = vshrl.u32 %v1810, 7
        %v1812 = vsub.s32 %v1028, %v1811
        %v1813 = vrot.slane %v1777, %v1812
        %v1814 = vsel %vm1033, %v1813, %v1809
        %v1815 = vlaneseq
        %v1816 = vshrl.u32 %v1815, 7
        %v1817 = vsub.s32 %v1035, %v1816
        %v1818 = vrot.slane %v1780, %v1817
        %v1819 = vsel %vm1040, %v1818, %v1814
        %v1821 = vunpack.c.l.s4 1966171168
        %v1822 = vunpack.c.0.s8 %v1821
        %v1823 = vlaneseq
        %v1824 = vshrl.u32 %v1823, 7
        %v1825 = vsub.s32 %v1822, %v1824
        %v1826 = vrot.slane %v1819, %v1825
        %v1828 = vunpack.c.l.s4 1966171168
        %v1829 = vunpack.c.0.s8 %v1828
        %v1830 = vlaneseq
        %v1831 = vshrl.u32 %v1830, 7
        %v1832 = vsub.s32 %v1829, %v1831
        %v1833 = vrot.slane %v1826, %v1832
        %v1835 = vadd.f32 %v1060, %v1833
        %1836 = vst.msk [vmem:[#allocation3] sm:$0x1] %vm1058, %v1835
        // Predicated region
        $region49: #{tpu_custom_call.1} parent=39 // pred_check
          %p1837 = pneg %p259
        $region50: #{tpu_custom_call.1} parent=39 // pred_check_branch
          %1839 = sbr.rel (%p1837) target = $region52
        $region51: #{tpu_custom_call.1} parent=39 // pred_region
          %v1840 = vld [vmem:[#allocation2] sm:$0x1]
          %v1841 = vmul.f32 %v1840, 0.00390625
          %v1842 = vld [vmem:[#allocation3] sm:$0x1]
          %v1843 = vmul.f32 %v1842, 0.00390625
          %v1844 = vmul.f32 %v1841, %v1841
          %v1845 = vsub.f32 %v1843, %v1844
          %v1846 = vmax.f32 %v1845, 0.0
          %v1847 = vrsqrt.pop %v1846
          %v1848 = vmul.f32 %v1846, %v1847
          %vm1849 = vcmp.eq.f32.partialorder %v1846, inf
          %v1850 = vsel %vm1849, %v1846, %v1848
          %vm1851 = vcmp.eq.f32.partialorder %v1846, 0.0
          %v1852 = vand.u32 %v1846, 2147483648
          %v1853 = vsel %vm1851, %v1852, %v1850
          %v1854 = vld [vmem:[%s1] sm:$0xff]
          %v1855 = vld [vmem:[%s1 + $0x8] sm:$0xff]
          %v1856 = vld [vmem:[%s1 + $0x10] sm:$0xff]
          %v1857 = vld [vmem:[%s1 + $0x18] sm:$0xff]
          %v1858 = vld [vmem:[%s1 + $0x20] sm:$0xff]
          %v1859 = vld [vmem:[%s1 + $0x28] sm:$0xff]
          %v1860 = vld [vmem:[%s1 + $0x30] sm:$0xff]
          %v1861 = vld [vmem:[%s1 + $0x38] sm:$0xff]
          %v1862 = vld [vmem:[%s2] sm:$0x1]
          %vm1863 = vcmask 523264
          %v1865 = vsel %vm1863, %v1841, 0
          %1867 = vmatprep.subr.mxu0 0.0
          %1868 = vmatpush1.msra.mxu0 0.0
          %1869 = vmatprep.subr.mxu0 0.0
          %1870 = vmatpush1.msra.mxu0 0.0
          %1871 = vmatprep.subr.mxu0 0.0
          %1872 = vmatpush1.msra.mxu0 0.0
          %1873 = vmatprep.subr.mxu0 0.0
          %1874 = vmatpush1.msra.mxu0 0.0
          %1875 = vmatprep.subr.mxu0 0.0
          %1876 = vmatpush1.msra.mxu0 0.0
          %1877 = vmatprep.subr.mxu0 0.0
          %1878 = vmatpush1.msra.mxu0 0.0
          %1879 = vmatprep.subr.mxu0 0.0
          %1880 = vmatpush1.msra.mxu0 0.0
          %1881 = vmatprep.subr.mxu0 0.0
          %1882 = vmatpush1.msra.mxu0 0.0
          %1883 = vmatprep.subr.mxu0 0.0
          %1884 = vmatpush1.msra.mxu0 %v1861
          %1885 = vmatprep.subr.mxu0 0.0
          %1886 = vmatpush1.msra.mxu0 %v1860
          %1887 = vmatprep.subr.mxu0 0.0
          %1888 = vmatpush1.msra.mxu0 %v1859
          %1889 = vmatprep.subr.mxu0 0.0
          %1890 = vmatpush1.msra.mxu0 %v1858
          %1891 = vmatprep.subr.mxu0 0.0
          %1892 = vmatpush1.msra.mxu0 %v1857
          %1893 = vmatprep.subr.mxu0 0.0
          %1894 = vmatpush1.msra.mxu0 %v1856
          %1895 = vmatprep.subr.mxu0 0.0
          %1896 = vmatpush1.msra.mxu0 %v1855
          %1897 = vmatprep.subr.mxu0 0.0
          %1898 = vmatpush1.msra.mxu0 %v1854
          %1899 = vmatprep.subr.mxu0 0.0
          %1900 = vmatpush2.msra.mxu0 0.0
          %1901 = vmatprep.subr.mxu0 0.0
          %1902 = vmatpush2.msra.mxu0 0.0
          %1903 = vmatprep.subr.mxu0 0.0
          %1904 = vmatpush2.msra.mxu0 0.0
          %1905 = vmatprep.subr.mxu0 0.0
          %1906 = vmatpush2.msra.mxu0 0.0
          %1907 = vmatprep.subr.mxu0 0.0
          %1908 = vmatpush2.msra.mxu0 0.0
          %1909 = vmatprep.subr.mxu0 0.0
          %1910 = vmatpush2.msra.mxu0 0.0
          %1911 = vmatprep.subr.mxu0 0.0
          %1912 = vmatpush2.msra.mxu0 0.0
          %1913 = vmatprep.subr.mxu0 0.0
          %1914 = vmatpush2.msra.mxu0 0.0
          %1915 = vmatprep.subr.mxu0 0.0
          %1916 = vmatpush2.msra.mxu0 0.0
          %1917 = vmatprep.subr.mxu0 0.0
          %1918 = vmatpush2.msra.mxu0 0.0
          %1919 = vmatprep.subr.mxu0 0.0
          %1920 = vmatpush2.msra.mxu0 0.0
          %1921 = vmatprep.subr.mxu0 0.0
          %1922 = vmatpush2.msra.mxu0 0.0
          %1923 = vmatprep.subr.mxu0 0.0
          %1924 = vmatpush2.msra.mxu0 0.0
          %1925 = vmatprep.subr.mxu0 0.0
          %1926 = vmatpush2.msra.mxu0 0.0
          %1927 = vmatprep.subr.mxu0 0.0
          %1928 = vmatpush2.msra.mxu0 0.0
          %1929 = vmatprep.subr.mxu0 0.0
          %1930 = vmatpush2.msra.mxu0 0.0
          %1931 = vmatprep.mubr.f32.mxu0 0.0
          %1932 = vmatmul.mubr.f32.gmra.mxu0 %v1865
          %v1933 = vpop.f32.mrf.mxu0
          %v1934 = vadd.f32 %v1862, %v1933
          %v1935 = vpop.f32.mrf.mxu0
          %1936 = vdwg.mxu0
          %v1937 = vmax.f32 %v1934, 0.0
          %v1938 = vld [vmem:[%s3] sm:$0xf]
          %v1939 = vld [vmem:[%s4] sm:$0x1]
          %vm1940 = vcmask 31744
          %v1942 = vsel %vm1940, %v1937, 0
          %vm1944 = vcmask 1043456
          %v1946 = vsel %vm1944, %v1938, 0
          %1948 = vmatprep.subr.mxu0 0.0
          %1949 = vmatpush1.msra.mxu0 0.0
          %1950 = vmatprep.subr.mxu0 0.0
          %1951 = vmatpush1.msra.mxu0 0.0
          %1952 = vmatprep.subr.mxu0 0.0
          %1953 = vmatpush1.msra.mxu0 0.0
          %1954 = vmatprep.subr.mxu0 0.0
          %1955 = vmatpush1.msra.mxu0 0.0
          %1956 = vmatprep.subr.mxu0 0.0
          %1957 = vmatpush1.msra.mxu0 0.0
          %1958 = vmatprep.subr.mxu0 0.0
          %1959 = vmatpush1.msra.mxu0 0.0
          %1960 = vmatprep.subr.mxu0 0.0
          %1961 = vmatpush1.msra.mxu0 0.0
          %1962 = vmatprep.subr.mxu0 0.0
          %1963 = vmatpush1.msra.mxu0 0.0
          %1964 = vmatprep.subr.mxu0 0.0
          %1965 = vmatpush1.msra.mxu0 0.0
          %1966 = vmatprep.subr.mxu0 0.0
          %1967 = vmatpush1.msra.mxu0 0.0
          %1968 = vmatprep.subr.mxu0 0.0
          %1969 = vmatpush1.msra.mxu0 0.0
          %1970 = vmatprep.subr.mxu0 0.0
          %1971 = vmatpush1.msra.mxu0 0.0
          %1972 = vmatprep.subr.mxu0 0.0
          %1973 = vmatpush1.msra.mxu0 0.0
          %1974 = vmatprep.subr.mxu0 0.0
          %1975 = vmatpush1.msra.mxu0 0.0
          %1976 = vmatprep.subr.mxu0 0.0
          %1977 = vmatpush1.msra.mxu0 0.0
          %1978 = vmatprep.subr.mxu0 0.0
          %1979 = vmatpush1.msra.mxu0 %v1946
          %1980 = vmatprep.subr.mxu0 0.0
          %1981 = vmatpush2.msra.mxu0 0.0
          %1982 = vmatprep.subr.mxu0 0.0
          %1983 = vmatpush2.msra.mxu0 0.0
          %1984 = vmatprep.subr.mxu0 0.0
          %1985 = vmatpush2.msra.mxu0 0.0
          %1986 = vmatprep.subr.mxu0 0.0
          %1987 = vmatpush2.msra.mxu0 0.0
          %1988 = vmatprep.subr.mxu0 0.0
          %1989 = vmatpush2.msra.mxu0 0.0
          %1990 = vmatprep.subr.mxu0 0.0
          %1991 = vmatpush2.msra.mxu0 0.0
          %1992 = vmatprep.subr.mxu0 0.0
          %1993 = vmatpush2.msra.mxu0 0.0
          %1994 = vmatprep.subr.mxu0 0.0
          %1995 = vmatpush2.msra.mxu0 0.0
          %1996 = vmatprep.subr.mxu0 0.0
          %1997 = vmatpush2.msra.mxu0 0.0
          %1998 = vmatprep.subr.mxu0 0.0
          %1999 = vmatpush2.msra.mxu0 0.0
          %2000 = vmatprep.subr.mxu0 0.0
          %2001 = vmatpush2.msra.mxu0 0.0
          %2002 = vmatprep.subr.mxu0 0.0
          %2003 = vmatpush2.msra.mxu0 0.0
          %2004 = vmatprep.subr.mxu0 0.0
          %2005 = vmatpush2.msra.mxu0 0.0
          %2006 = vmatprep.subr.mxu0 0.0
          %2007 = vmatpush2.msra.mxu0 0.0
          %2008 = vmatprep.subr.mxu0 0.0
          %2009 = vmatpush2.msra.mxu0 0.0
          %2010 = vmatprep.subr.mxu0 0.0
          %2011 = vmatpush2.msra.mxu0 0.0
          %2012 = vmatprep.mubr.f32.mxu0 0.0
          %2013 = vmatmul.mubr.f32.gmra.mxu0 %v1942
          %v2014 = vpop.f32.mrf.mxu0
          %v2015 = vadd.f32 %v1939, %v2014
          %v2016 = vpop.f32.mrf.mxu0
          %2017 = vdwg.mxu0
          %v2018 = vmax.f32 %v2015, 0.0
          %v2019 = vsub.f32 0.0, %v2018
          %v2020 = vmul.f32 %v2019, 1.442695
          %v2021 = vpow.pop %v2020
          %v2022 = vadd.f32 %v2021, 1.0
          %v2023 = vrcp.pop %v2022
          %v2024 = vmul.f32 1.0, %v2023
          %s2025 = scalar_lea.vmem %s1, 64
          %v2026 = vld [vmem:[%s2025] sm:$0xff]
          %v2027 = vld [vmem:[%s2025 + $0x8] sm:$0xff]
          %v2028 = vld [vmem:[%s2025 + $0x10] sm:$0xff]
          %v2029 = vld [vmem:[%s2025 + $0x18] sm:$0xff]
          %v2030 = vld [vmem:[%s2025 + $0x20] sm:$0xff]
          %v2031 = vld [vmem:[%s2025 + $0x28] sm:$0xff]
          %v2032 = vld [vmem:[%s2025 + $0x30] sm:$0xff]
          %v2033 = vld [vmem:[%s2025 + $0x38] sm:$0xff]
          %s2034 = scalar_lea.vmem %s2, 1
          %v2035 = vld [vmem:[%s2034] sm:$0x1]
          %v2037 = vsel %vm1863, %v1853, 0
          %2039 = vmatprep.subr.mxu0 0.0
          %2040 = vmatpush1.msra.mxu0 0.0
          %2041 = vmatprep.subr.mxu0 0.0
          %2042 = vmatpush1.msra.mxu0 0.0
          %2043 = vmatprep.subr.mxu0 0.0
          %2044 = vmatpush1.msra.mxu0 0.0
          %2045 = vmatprep.subr.mxu0 0.0
          %2046 = vmatpush1.msra.mxu0 0.0
          %2047 = vmatprep.subr.mxu0 0.0
          %2048 = vmatpush1.msra.mxu0 0.0
          %2049 = vmatprep.subr.mxu0 0.0
          %2050 = vmatpush1.msra.mxu0 0.0
          %2051 = vmatprep.subr.mxu0 0.0
          %2052 = vmatpush1.msra.mxu0 0.0
          %2053 = vmatprep.subr.mxu0 0.0
          %2054 = vmatpush1.msra.mxu0 0.0
          %2055 = vmatprep.subr.mxu0 0.0
          %2056 = vmatpush1.msra.mxu0 %v2033
          %2057 = vmatprep.subr.mxu0 0.0
          %2058 = vmatpush1.msra.mxu0 %v2032
          %2059 = vmatprep.subr.mxu0 0.0
          %2060 = vmatpush1.msra.mxu0 %v2031
          %2061 = vmatprep.subr.mxu0 0.0
          %2062 = vmatpush1.msra.mxu0 %v2030
          %2063 = vmatprep.subr.mxu0 0.0
          %2064 = vmatpush1.msra.mxu0 %v2029
          %2065 = vmatprep.subr.mxu0 0.0
          %2066 = vmatpush1.msra.mxu0 %v2028
          %2067 = vmatprep.subr.mxu0 0.0
          %2068 = vmatpush1.msra.mxu0 %v2027
          %2069 = vmatprep.subr.mxu0 0.0
          %2070 = vmatpush1.msra.mxu0 %v2026
          %2071 = vmatprep.subr.mxu0 0.0
          %2072 = vmatpush2.msra.mxu0 0.0
          %2073 = vmatprep.subr.mxu0 0.0
          %2074 = vmatpush2.msra.mxu0 0.0
          %2075 = vmatprep.subr.mxu0 0.0
          %2076 = vmatpush2.msra.mxu0 0.0
          %2077 = vmatprep.subr.mxu0 0.0
          %2078 = vmatpush2.msra.mxu0 0.0
          %2079 = vmatprep.subr.mxu0 0.0
          %2080 = vmatpush2.msra.mxu0 0.0
          %2081 = vmatprep.subr.mxu0 0.0
          %2082 = vmatpush2.msra.mxu0 0.0
          %2083 = vmatprep.subr.mxu0 0.0
          %2084 = vmatpush2.msra.mxu0 0.0
          %2085 = vmatprep.subr.mxu0 0.0
          %2086 = vmatpush2.msra.mxu0 0.0
          %2087 = vmatprep.subr.mxu0 0.0
          %2088 = vmatpush2.msra.mxu0 0.0
          %2089 = vmatprep.subr.mxu0 0.0
          %2090 = vmatpush2.msra.mxu0 0.0
          %2091 = vmatprep.subr.mxu0 0.0
          %2092 = vmatpush2.msra.mxu0 0.0
          %2093 = vmatprep.subr.mxu0 0.0
          %2094 = vmatpush2.msra.mxu0 0.0
          %2095 = vmatprep.subr.mxu0 0.0
          %2096 = vmatpush2.msra.mxu0 0.0
          %2097 = vmatprep.subr.mxu0 0.0
          %2098 = vmatpush2.msra.mxu0 0.0
          %2099 = vmatprep.subr.mxu0 0.0
          %2100 = vmatpush2.msra.mxu0 0.0
          %2101 = vmatprep.subr.mxu0 0.0
          %2102 = vmatpush2.msra.mxu0 0.0
          %2103 = vmatprep.mubr.f32.mxu0 0.0
          %2104 = vmatmul.mubr.f32.gmra.mxu0 %v2037
          %v2105 = vpop.f32.mrf.mxu0
          %v2106 = vadd.f32 %v2035, %v2105
          %v2107 = vpop.f32.mrf.mxu0
          %2108 = vdwg.mxu0
          %v2109 = vmax.f32 %v2106, 0.0
          %s2110 = scalar_lea.vmem %s3, 4
          %v2111 = vld [vmem:[%s2110] sm:$0xf]
          %s2112 = scalar_lea.vmem %s4, 1
          %v2113 = vld [vmem:[%s2112] sm:$0x1]
          %v2115 = vsel %vm1940, %v2109, 0
          %v2118 = vsel %vm1944, %v2111, 0
          %2120 = vmatprep.subr.mxu0 0.0
          %2121 = vmatpush1.msra.mxu0 0.0
          %2122 = vmatprep.subr.mxu0 0.0
          %2123 = vmatpush1.msra.mxu0 0.0
          %2124 = vmatprep.subr.mxu0 0.0
          %2125 = vmatpush1.msra.mxu0 0.0
          %2126 = vmatprep.subr.mxu0 0.0
          %2127 = vmatpush1.msra.mxu0 0.0
          %2128 = vmatprep.subr.mxu0 0.0
          %2129 = vmatpush1.msra.mxu0 0.0
          %2130 = vmatprep.subr.mxu0 0.0
          %2131 = vmatpush1.msra.mxu0 0.0
          %2132 = vmatprep.subr.mxu0 0.0
          %2133 = vmatpush1.msra.mxu0 0.0
          %2134 = vmatprep.subr.mxu0 0.0
          %2135 = vmatpush1.msra.mxu0 0.0
          %2136 = vmatprep.subr.mxu0 0.0
          %2137 = vmatpush1.msra.mxu0 0.0
          %2138 = vmatprep.subr.mxu0 0.0
          %2139 = vmatpush1.msra.mxu0 0.0
          %2140 = vmatprep.subr.mxu0 0.0
          %2141 = vmatpush1.msra.mxu0 0.0
          %2142 = vmatprep.subr.mxu0 0.0
          %2143 = vmatpush1.msra.mxu0 0.0
          %2144 = vmatprep.subr.mxu0 0.0
          %2145 = vmatpush1.msra.mxu0 0.0
          %2146 = vmatprep.subr.mxu0 0.0
          %2147 = vmatpush1.msra.mxu0 0.0
          %2148 = vmatprep.subr.mxu0 0.0
          %2149 = vmatpush1.msra.mxu0 0.0
          %2150 = vmatprep.subr.mxu0 0.0
          %2151 = vmatpush1.msra.mxu0 %v2118
          %2152 = vmatprep.subr.mxu0 0.0
          %2153 = vmatpush2.msra.mxu0 0.0
          %2154 = vmatprep.subr.mxu0 0.0
          %2155 = vmatpush2.msra.mxu0 0.0
          %2156 = vmatprep.subr.mxu0 0.0
          %2157 = vmatpush2.msra.mxu0 0.0
          %2158 = vmatprep.subr.mxu0 0.0
          %2159 = vmatpush2.msra.mxu0 0.0
          %2160 = vmatprep.subr.mxu0 0.0
          %2161 = vmatpush2.msra.mxu0 0.0
          %2162 = vmatprep.subr.mxu0 0.0
          %2163 = vmatpush2.msra.mxu0 0.0
          %2164 = vmatprep.subr.mxu0 0.0
          %2165 = vmatpush2.msra.mxu0 0.0
          %2166 = vmatprep.subr.mxu0 0.0
          %2167 = vmatpush2.msra.mxu0 0.0
          %2168 = vmatprep.subr.mxu0 0.0
          %2169 = vmatpush2.msra.mxu0 0.0
          %2170 = vmatprep.subr.mxu0 0.0
          %2171 = vmatpush2.msra.mxu0 0.0
          %2172 = vmatprep.subr.mxu0 0.0
          %2173 = vmatpush2.msra.mxu0 0.0
          %2174 = vmatprep.subr.mxu0 0.0
          %2175 = vmatpush2.msra.mxu0 0.0
          %2176 = vmatprep.subr.mxu0 0.0
          %2177 = vmatpush2.msra.mxu0 0.0
          %2178 = vmatprep.subr.mxu0 0.0
          %2179 = vmatpush2.msra.mxu0 0.0
          %2180 = vmatprep.subr.mxu0 0.0
          %2181 = vmatpush2.msra.mxu0 0.0
          %2182 = vmatprep.subr.mxu0 0.0
          %2183 = vmatpush2.msra.mxu0 0.0
          %2184 = vmatprep.mubr.f32.mxu0 0.0
          %2185 = vmatmul.mubr.f32.gmra.mxu0 %v2115
          %v2186 = vpop.f32.mrf.mxu0
          %v2187 = vadd.f32 %v2113, %v2186
          %v2188 = vpop.f32.mrf.mxu0
          %2189 = vdwg.mxu0
          %v2190 = vmax.f32 %v2187, 0.0
          %v2191 = vsub.f32 0.0, %v2190
          %v2192 = vmul.f32 %v2191, 1.442695
          %v2193 = vpow.pop %v2192
          %v2194 = vadd.f32 %v2193, 1.0
          %v2195 = vrcp.pop %v2194
          %v2196 = vmul.f32 1.0, %v2195
          %v2197 = vadd.f32 %v2024, %v2196
          %v2198 = vmul.f32 %v2197, 0.5
          %2199 = vst.msk [vmem:[%s257] sm:$0x1] %vm1058, %v2198
        $region52: #{tpu_custom_call.1} parent=39 // pred_fallthru
          _
        %s2200 = sand.u32 %s154, 1
        %s2201 = scalar_lea.sflag [#allocation6], %s2200
        %s2202 = sand.u32 %s154, 1
        %s2203 = scalar_lea.vmem [#allocation7], %s2202
        // Predicated region
        $region53: #{tpu_custom_call.1} parent=39 // pred_check
          %p2204 = pneg %p164
        $region54: #{tpu_custom_call.1} parent=39 // pred_check_branch
          %2206 = sbr.rel (%p2204) target = $region56
        $region55: #{tpu_custom_call.1} parent=39 // pred_region
          %s2208 = ssub.s32 16, 16
          %2209 = vsyncadd %s2201, %s2208
          %s2210 = smul.addr %s26, 16
          %s2211 = scalar_lea.hbm %s5, %s2210
          %s2213 = sshll.u32 %s2203, 4
          %s2214 = int_to_ptr.vmem [resolvable:$true] %s2213
          %2216 = dma.vmem_to_hbm [thread:$0]  %s2214, 16, %s2211, %s2201
        $region56: #{tpu_custom_call.1} parent=39 // pred_fallthru
          _
      $region40: #{tpu_custom_call.1} parent=5 // pred_fallthru
        _
      %p2217 = scmp.le.s32.totalorder 2, %s17
      // Predicated region
      $region57: #{tpu_custom_call.1} parent=5 // pred_check
        %p2218 = pneg %p2217
      $region58: #{tpu_custom_call.1} parent=5 // pred_check_branch
        %2220 = sbr.rel (%p2218) target = $region60
      $region59: #{tpu_custom_call.1} parent=5 // pred_region
        %s2221 = ssub.s32 %s17, 2
        // Predicated region
        $region61: #{tpu_custom_call.1} parent=59 // pred_check
          %p2222 = pneg %p170
        $region62: #{tpu_custom_call.1} parent=59 // pred_check_branch
          %2224 = sbr.rel (%p2222) target = $region64
        $region63: #{tpu_custom_call.1} parent=59 // pred_region
          %s2225 = sand.u32 %s155, 1
          %s2226 = scalar_lea.sflag [#allocation6], %s2225
          %s2227 = sand.u32 %s155, 1
          %s2228 = scalar_lea.vmem [#allocation7], %s2227
          %2229 = dma.done %s2226, 16
        $region64: #{tpu_custom_call.1} parent=59 // pred_fallthru
          _
      $region60: #{tpu_custom_call.1} parent=5 // pred_fallthru
        _
    $region6: #{tpu_custom_call.1} parent=1 // loop_footer
      %s21 = sadd.s32 1, %s17
    $region7: #{tpu_custom_call.1} parent=1 // loop_footer_branch
      %16 = sbr.rel target = $region3
    $region8: #{tpu_custom_call.1} parent=1 // loop_exit
      _
    %2230 = vsyncpa [#allocation5], 1
    %s2231 = scalar_lea.sflag [#allocation5], 1
    %2232 = vsyncpa %s2231, 1
    %2233 = vsyncpa [#allocation6], 1
    %s2234 = scalar_lea.sflag [#allocation6], 1
    %2235 = vsyncpa %s2234, 1

</llo_original>
